<compile_context>
chip_gen: v7x
topology: tpu7x:2x2x1
jax: 0.10.0
libtpu: 0.0.40
codegen_flags: <defaults>
</compile_context>

<pallas_src>
import functools

import jax
import jax.numpy as jnp
from jax.experimental import pallas as pl
from jax.experimental.pallas import tpu as pltpu

_MIB = 1024 * 1024
_VMEM_CAP = None


def _vmem_capacity_bytes():
    """Physical VMEM of the local TPU generation (128 MiB v5e/v6e, 64 MiB v7x)."""
    global _VMEM_CAP
    if _VMEM_CAP is None:
        cap = 64 * _MIB                       # conservative fallback (v7x floor)
        try:
            info = pltpu.get_tpu_info()
            cap = int(getattr(info, "vmem_capacity_bytes", cap)) or cap
        except Exception:
            pass
        _VMEM_CAP = cap
    return _VMEM_CAP


def _round_up(x, m):
    return (x + m - 1) // m * m


def _tile_candidates(hidden):
    """Divisors of `hidden` usable as lane-tile sizes (multiples of 128), plus
    `hidden` itself, largest first.  hidden % T == 0 always holds, so no
    trailing hidden columns/rows are ever dropped."""
    cands = {hidden}
    for t in range(128, hidden, 128):
        if hidden % t == 0:
            cands.add(t)
    return sorted(cands, reverse=True)


def _resident_bytes(B, C):
    """Padded VMEM bytes resident regardless of the hidden-tile size."""
    Cl = _round_up(C, 128)
    b16 = _round_up(B, 16)                    # bf16 sublane padding
    b8 = _round_up(B, 8)                      # f32 sublane padding
    r = 0
    r += 2 * 2 * b16 * Cl * 2                 # g, l: (B,C) bf16, 2 buffers each
    r += 2 * b8 * Cl * 4                      # out:  (B,C) f32, 2 buffers
    r += 2 * 2 * 8 * Cl * 4                   # b2, b4: (1,C) f32 -> 8 sublanes
    r += b8 * Cl * 4                          # mem_acc scratch (single buffer)
    return r


def _weight_tile_bytes(C, t, nbuf):
    """Padded VMEM bytes for one hidden-tile worth of weight/bias blocks."""
    Cl = _round_up(C, 128)
    Cs = _round_up(C, 16)                     # bf16 sublane padding of C rows
    per = (3 * Cs * t * 2                     # w1, w3m, w3l : (C, t) bf16
           + 2 * t * Cl * 2                   # w2, w4       : (t, C) bf16
           + 2 * 8 * t * 4)                   # b1, b3       : (1, t) f32 padded
    return nbuf * per


def _pick_hidden_tile(B, C, hidden, vmem_limit):
    budget = vmem_limit - _resident_bytes(B, C) - 2 * _MIB   # compiler slack
    cands = _tile_candidates(hidden)
    for t in cands:
        n_tiles = hidden // t
        nbuf = 2 if n_tiles < 4 else 3        # matches pl.Buffered(3) policy
        if _weight_tile_bytes(C, t, nbuf) <= budget:
            return t
    return cands[-1]                          # smallest legal tile; never drops data


def _mega_fused_kernel(g_ref, l_ref, w1_ref, b1_ref, w2_ref, b2_ref,
                       w3m_ref, w3l_ref, b3_ref, w4_ref, b4_ref, out_ref):
    """Single-step path (hidden fits in one tile): memory MLP + aggregation MLP
    back-to-back, all weight DMAs issued up-front, no scratch accumulator."""
    h1 = jnp.dot(g_ref[...], w1_ref[...],
                 preferred_element_type=jnp.float32) + b1_ref[...]
    h1 = jnp.maximum(h1, 0.0)
    mem = jnp.dot(h1.astype(jnp.bfloat16), w2_ref[...],
                  preferred_element_type=jnp.float32) + b2_ref[...]
    # cat([mem, local]) @ W3 == mem @ W3[:C] + local @ W3[C:]
    h2 = (jnp.dot(mem.astype(jnp.bfloat16), w3m_ref[...],
                  preferred_element_type=jnp.float32)
          + jnp.dot(l_ref[...], w3l_ref[...],
                    preferred_element_type=jnp.float32)
          + b3_ref[...])
    h2 = jnp.maximum(h2, 0.0)
    out_ref[...] = jnp.dot(h2.astype(jnp.bfloat16), w4_ref[...],
                           preferred_element_type=jnp.float32) + b4_ref[...]


def _mega_tiled_kernel(n_tiles,
                       g_ref, l_ref, w1_ref, b1_ref, w2_ref, b2_ref,
                       w3m_ref, w3l_ref, b3_ref, w4_ref, b4_ref,
                       out_ref, mem_acc):
    """Hidden dim streamed in tiles: memory-MLP stage (i < n_tiles) then
    aggregation-MLP stage (i >= n_tiles), with resident f32 accumulators."""
    i = pl.program_id(0)

    @pl.when(i == 0)
    def _init():
        mem_acc[...] = jnp.broadcast_to(b2_ref[...], mem_acc.shape)
        out_ref[...] = jnp.broadcast_to(b4_ref[...], out_ref.shape)

    @pl.when(i < n_tiles)
    def _memory_stage():
        h1 = jnp.dot(g_ref[...], w1_ref[...],
                     preferred_element_type=jnp.float32) + b1_ref[...]
        h1 = jnp.maximum(h1, 0.0)
        mem_acc[...] += jnp.dot(h1.astype(jnp.bfloat16), w2_ref[...],
                                preferred_element_type=jnp.float32)

    @pl.when(i >= n_tiles)
    def _aggregation_stage():
        mem = mem_acc[...].astype(jnp.bfloat16)
        h2 = (jnp.dot(mem, w3m_ref[...], preferred_element_type=jnp.float32)
              + jnp.dot(l_ref[...], w3l_ref[...],
                        preferred_element_type=jnp.float32)
              + b3_ref[...])
        h2 = jnp.maximum(h2, 0.0)
        out_ref[...] += jnp.dot(h2.astype(jnp.bfloat16), w4_ref[...],
                                preferred_element_type=jnp.float32)


def init_mega_params(key, num_features, hidden=1024, weight_dtype=jnp.bfloat16):
    """PyTorch-layer-shaped params: weights stored transposed (in, out), the
    aggregation input weight pre-split for the channel concat, and weights
    cast to bf16 (biases stay f32; the kernel accumulates in f32)."""
    def linear(k, fan_in, fan_out):
        bound = 1.0 / jnp.sqrt(jnp.asarray(fan_in, jnp.float32))
        kw, kb = jax.random.split(k)
        w = jax.random.uniform(kw, (fan_in, fan_out), jnp.float32, -bound, bound)
        b = jax.random.uniform(kb, (1, fan_out), jnp.float32, -bound, bound)
        return w, b

    k1, k2, k3, k4 = jax.random.split(key, 4)
    w1, b1 = linear(k1, num_features, hidden)            # memory[0]
    w2, b2 = linear(k2, hidden, num_features)            # memory[2]
    w3, b3 = linear(k3, 2 * num_features, hidden)        # aggregation[0]
    w4, b4 = linear(k4, hidden, num_features)            # aggregation[2]
    w3m, w3l = w3[:num_features, :], w3[num_features:, :]
    c = lambda w: w.astype(weight_dtype)
    return (c(w1), b1, c(w2), b2, c(w3m), c(w3l), b3, c(w4), b4)


@jax.jit
def mega_forward(x_nchw, params):
    B, C, H, W = x_nchw.shape
    # TODO(synk): general-spatial MaxPool2d output cannot be concatenated with
    # the (B, C, 1, 1) memory features as written in the reference module, so
    # the kernel requires the 3x3/stride-2/pad-1 pool output to be 1x1.
    assert H <= 2 and W <= 2, "aggregation requires max-pool output of (1,1)"
    w1, b1, w2, b2, w3m, w3l, b3, w4, b4 = params
    hidden = w1.shape[1]

    # Pooling hoisted out of the kernel: x is read from HBM exactly once and
    # only the tiny bf16 (B, C) pooled features reach the kernel.
    xf = x_nchw.reshape(B, C, H * W).astype(jnp.float32)
    g = jnp.mean(xf, axis=-1).astype(jnp.bfloat16)        # AdaptiveAvgPool2d((1,1))
    l = jnp.max(xf, axis=-1).astype(jnp.bfloat16)         # MaxPool2d(3,2,1) -> 1x1

    cap = _vmem_capacity_bytes()
    vmem_limit = min(cap - 8 * _MIB, 100 * _MIB)          # 56 MiB v7x, 100 MiB v5e/v6e
    T = _pick_hidden_tile(B, C, hidden, vmem_limit)
    n_tiles = hidden // T

    if n_tiles == 1:
        # Small models: one grid step, no cold branches, no scratch round-trip.
        vspec = pl.BlockSpec(memory_space=pltpu.MemorySpace.VMEM)
        return pl.pallas_call(
            _mega_fused_kernel,
            out_shape=jax.ShapeDtypeStruct((B, C), jnp.float32),
            in_specs=[vspec] * 11,
            out_specs=vspec,
            compiler_params=pltpu.CompilerParams(vmem_limit_bytes=vmem_limit),
        )(g, l, w1, b1, w2, b2, w3m, w3l, b3, w4, b4)

    last_mem = n_tiles - 1
    # Monotone index maps: each weight tile is DMA'd exactly once; blocks whose
    # index does not change between consecutive steps are not re-fetched.
    mem_col = lambda i: (0, jnp.minimum(i, last_mem))     # (C, hidden) col tiles
    mem_row = lambda i: (jnp.minimum(i, last_mem), 0)     # (hidden, C) row tiles
    agg_col = lambda i: (0, jnp.maximum(i - n_tiles, 0))
    agg_row = lambda i: (jnp.maximum(i - n_tiles, 0), 0)
    const2 = lambda i: (0, 0)

    # Per-tile compute on a tiny LHS is ~zero, so the pipeline is pure DMA;
    # keep >=2 weight DMAs in flight once tiles get small.
    wkw = {"pipeline_mode": pl.Buffered(3)} if n_tiles >= 4 else {}

    in_specs = [
        pl.BlockSpec((B, C), const2),                     # g
        pl.BlockSpec((B, C), const2),                     # l
        pl.BlockSpec((C, T), mem_col, **wkw),             # w1
        pl.BlockSpec((1, T), mem_col),                    # b1
        pl.BlockSpec((T, C), mem_row, **wkw),             # w2
        pl.BlockSpec((1, C), const2),                     # b2
        pl.BlockSpec((C, T), agg_col, **wkw),             # w3m
        pl.BlockSpec((C, T), agg_col, **wkw),             # w3l
        pl.BlockSpec((1, T), agg_col),                    # b3
        pl.BlockSpec((T, C), agg_row, **wkw),             # w4
        pl.BlockSpec((1, C), const2),                     # b4
    ]

    return pl.pallas_call(
        functools.partial(_mega_tiled_kernel, n_tiles),
        out_shape=jax.ShapeDtypeStruct((B, C), jnp.float32),
        grid_spec=pltpu.PrefetchScalarGridSpec(
            num_scalar_prefetch=0,
            grid=(2 * n_tiles,),                          # memory stage, then agg stage
            in_specs=in_specs,
            out_specs=pl.BlockSpec((B, C), const2),
            scratch_shapes=[pltpu.VMEM((B, C), jnp.float32)],   # mem accumulator
        ),
        compiler_params=pltpu.CompilerParams(
            # Strictly serial chain (aggregation needs the full memory output);
            # batch-splitting would duplicate weight traffic, so not parallel.
            dimension_semantics=("arbitrary",),
            vmem_limit_bytes=vmem_limit,
        ),
    )(g, l, w1, b1, w2, b2, w3m, w3l, b3, w4, b4)


def mega_reference(x_nchw, params):
    """Plain-JAX reference of the same (runnable) semantics and precision
    (bf16 weights / bf16-rounded matmul inputs, f32 accumulation)."""
    w1, b1, w2, b2, w3m, w3l, b3, w4, b4 = params
    f32 = lambda a: a.astype(jnp.float32)
    r16 = lambda a: a.astype(jnp.bfloat16).astype(jnp.float32)
    g = jnp.mean(x_nchw.astype(jnp.float32), axis=(2, 3))   # AdaptiveAvgPool2d((1,1))
    l = jnp.max(x_nchw.astype(jnp.float32), axis=(2, 3))    # MaxPool2d(3,2,1) -> 1x1
    h1 = jnp.maximum(r16(g) @ f32(w1) + b1, 0.0)
    mem = r16(h1) @ f32(w2) + b2
    h2 = jnp.maximum(r16(mem) @ f32(w3m) + r16(l) @ f32(w3l) + b3, 0.0)
    return r16(h2) @ f32(w4) + b4


if __name__ == "__main__":
    key = jax.random.PRNGKey(0)
    kx, kp = jax.random.split(key)

    B, C, H, W = 2, 32, 2, 2                              # num_features = 32
    x = jax.random.normal(kx, (B, C, H, W), jnp.float32)
    params = init_mega_params(kp, num_features=C)

    out = jax.block_until_ready(mega_forward(x, params))
    ref = jax.block_until_ready(mega_reference(x, params))

    assert out.shape == (B, C), out.shape
    assert jnp.allclose(out, ref, rtol=2e-2, atol=2e-2), (
        "mismatch vs reference, max abs err = "
        + str(float(jnp.max(jnp.abs(out - ref)))))
    print("KERNEL_OK")
</pallas_src>

<mosaic_0001>
module attributes {stable_mosaic.version = 11 : i64} {
  func.func @_mega_fused_kernel(%arg0: memref<2x32xbf16, #tpu.memory_space<vmem>>, %arg1: memref<2x32xbf16, #tpu.memory_space<vmem>>, %arg2: memref<32x1024xbf16, #tpu.memory_space<vmem>>, %arg3: memref<1x1024xf32, #tpu.memory_space<vmem>>, %arg4: memref<1024x32xbf16, #tpu.memory_space<vmem>>, %arg5: memref<1x32xf32, #tpu.memory_space<vmem>>, %arg6: memref<32x1024xbf16, #tpu.memory_space<vmem>>, %arg7: memref<32x1024xbf16, #tpu.memory_space<vmem>>, %arg8: memref<1x1024xf32, #tpu.memory_space<vmem>>, %arg9: memref<1024x32xbf16, #tpu.memory_space<vmem>>, %arg10: memref<1x32xf32, #tpu.memory_space<vmem>>, %arg11: memref<2x32xf32, #tpu.memory_space<vmem>>) attributes {dimension_semantics = [], scalar_prefetch = 0 : i64, scratch_operands = 0 : i64, tpu.core_type = #tpu.core_type<tc>} {
    %c0 = arith.constant 0 : index
    %c0_0 = arith.constant 0 : index
    %0 = vector.load %arg0[%c0, %c0_0] : memref<2x32xbf16, #tpu.memory_space<vmem>>, vector<2x32xbf16>
    %c0_1 = arith.constant 0 : index
    %c0_2 = arith.constant 0 : index
    %1 = vector.load %arg2[%c0_1, %c0_2] : memref<32x1024xbf16, #tpu.memory_space<vmem>>, vector<32x1024xbf16>
    %cst = arith.constant dense<0.000000e+00> : vector<2x1024xf32>
    %2 = tpu.matmul %0, %1, %cst {dimension_numbers = #tpu.dot_dimension_numbers<[1], [0], [0], [1], [0, 0, 1, 1], [], []>} : vector<2x32xbf16>, vector<32x1024xbf16>, vector<2x1024xf32> -> vector<2x1024xf32>
    %c0_3 = arith.constant 0 : index
    %c0_4 = arith.constant 0 : index
    %3 = vector.load %arg3[%c0_3, %c0_4] : memref<1x1024xf32, #tpu.memory_space<vmem>>, vector<1x1024xf32>
    %4 = vector.broadcast %3 : vector<1x1024xf32> to vector<2x1024xf32>
    %5 = arith.addf %2, %4 : vector<2x1024xf32>
    %cst_5 = arith.constant 0.000000e+00 : f32
    %6 = vector.broadcast %cst_5 : f32 to vector<2x1024xf32>
    %7 = arith.maximumf %5, %6 : vector<2x1024xf32>
    %8 = arith.truncf %7 : vector<2x1024xf32> to vector<2x1024xbf16>
    %c0_6 = arith.constant 0 : index
    %c0_7 = arith.constant 0 : index
    %9 = vector.load %arg4[%c0_6, %c0_7] : memref<1024x32xbf16, #tpu.memory_space<vmem>>, vector<1024x32xbf16>
    %cst_8 = arith.constant dense<0.000000e+00> : vector<2x32xf32>
    %10 = tpu.matmul %8, %9, %cst_8 {dimension_numbers = #tpu.dot_dimension_numbers<[1], [0], [0], [1], [0, 0, 1, 1], [], []>} : vector<2x1024xbf16>, vector<1024x32xbf16>, vector<2x32xf32> -> vector<2x32xf32>
    %c0_9 = arith.constant 0 : index
    %c0_10 = arith.constant 0 : index
    %11 = vector.load %arg5[%c0_9, %c0_10] : memref<1x32xf32, #tpu.memory_space<vmem>>, vector<1x32xf32>
    %12 = vector.broadcast %11 : vector<1x32xf32> to vector<2x32xf32>
    %13 = arith.addf %10, %12 : vector<2x32xf32>
    %14 = arith.truncf %13 : vector<2x32xf32> to vector<2x32xbf16>
    %c0_11 = arith.constant 0 : index
    %c0_12 = arith.constant 0 : index
    %15 = vector.load %arg6[%c0_11, %c0_12] : memref<32x1024xbf16, #tpu.memory_space<vmem>>, vector<32x1024xbf16>
    %cst_13 = arith.constant dense<0.000000e+00> : vector<2x1024xf32>
    %16 = tpu.matmul %14, %15, %cst_13 {dimension_numbers = #tpu.dot_dimension_numbers<[1], [0], [0], [1], [0, 0, 1, 1], [], []>} : vector<2x32xbf16>, vector<32x1024xbf16>, vector<2x1024xf32> -> vector<2x1024xf32>
    %c0_14 = arith.constant 0 : index
    %c0_15 = arith.constant 0 : index
    %17 = vector.load %arg1[%c0_14, %c0_15] : memref<2x32xbf16, #tpu.memory_space<vmem>>, vector<2x32xbf16>
    %c0_16 = arith.constant 0 : index
    %c0_17 = arith.constant 0 : index
    %18 = vector.load %arg7[%c0_16, %c0_17] : memref<32x1024xbf16, #tpu.memory_space<vmem>>, vector<32x1024xbf16>
    %cst_18 = arith.constant dense<0.000000e+00> : vector<2x1024xf32>
    %19 = tpu.matmul %17, %18, %cst_18 {dimension_numbers = #tpu.dot_dimension_numbers<[1], [0], [0], [1], [0, 0, 1, 1], [], []>} : vector<2x32xbf16>, vector<32x1024xbf16>, vector<2x1024xf32> -> vector<2x1024xf32>
    %20 = arith.addf %16, %19 : vector<2x1024xf32>
    %c0_19 = arith.constant 0 : index
    %c0_20 = arith.constant 0 : index
    %21 = vector.load %arg8[%c0_19, %c0_20] : memref<1x1024xf32, #tpu.memory_space<vmem>>, vector<1x1024xf32>
    %22 = vector.broadcast %21 : vector<1x1024xf32> to vector<2x1024xf32>
    %23 = arith.addf %20, %22 : vector<2x1024xf32>
    %cst_21 = arith.constant 0.000000e+00 : f32
    %24 = vector.broadcast %cst_21 : f32 to vector<2x1024xf32>
    %25 = arith.maximumf %23, %24 : vector<2x1024xf32>
    %26 = arith.truncf %25 : vector<2x1024xf32> to vector<2x1024xbf16>
    %c0_22 = arith.constant 0 : index
    %c0_23 = arith.constant 0 : index
    %27 = vector.load %arg9[%c0_22, %c0_23] : memref<1024x32xbf16, #tpu.memory_space<vmem>>, vector<1024x32xbf16>
    %cst_24 = arith.constant dense<0.000000e+00> : vector<2x32xf32>
    %28 = tpu.matmul %26, %27, %cst_24 {dimension_numbers = #tpu.dot_dimension_numbers<[1], [0], [0], [1], [0, 0, 1, 1], [], []>} : vector<2x1024xbf16>, vector<1024x32xbf16>, vector<2x32xf32> -> vector<2x32xf32>
    %c0_25 = arith.constant 0 : index
    %c0_26 = arith.constant 0 : index
    %29 = vector.load %arg10[%c0_25, %c0_26] : memref<1x32xf32, #tpu.memory_space<vmem>>, vector<1x32xf32>
    %30 = vector.broadcast %29 : vector<1x32xf32> to vector<2x32xf32>
    %31 = arith.addf %28, %30 : vector<2x32xf32>
    %c0_27 = arith.constant 0 : index
    %c0_28 = arith.constant 0 : index
    %32 = vector.load %arg11[%c0_27, %c0_28] : memref<2x32xf32, #tpu.memory_space<vmem>>, vector<2x32xf32>
    tpu.vector_store %arg11[%c0_27, %c0_28], %31 {strides = array<i32>} : memref<2x32xf32, #tpu.memory_space<vmem>>, vector<2x32xf32>,
    return
  }
}

</mosaic_0001>

<llo_original>
// kernel: mega_forward.1
$region0: #{mega_forward.1}
  #allocation0 [shape = 'u32[]', space=smem, size = 0x4, offset = 0x4, fixed_abs, tag = 'smem constant byte address 0x4 - core index']
  #allocation1 [shape = 'u32[144,128]{1,0:T(1,128)}', space=vmem, size = 0x12000, scoped, tag = 'internal scratch']
  %s0 = inlined_call_operand.vmem [shape: bf16[2,32], index: 0, kind: input, shape index: {}]
  %s1 = inlined_call_operand.vmem [shape: bf16[2,32], index: 1, kind: input, shape index: {}]
  %s2 = inlined_call_operand.vmem [shape: bf16[32,1024], index: 2, kind: input, shape index: {}]
  %s3 = inlined_call_operand.vmem [shape: f32[1,1024], index: 3, kind: input, shape index: {}]
  %s4 = inlined_call_operand.vmem [shape: bf16[1024,32], index: 4, kind: input, shape index: {}]
  %s5 = inlined_call_operand.vmem [shape: f32[1,32], index: 5, kind: input, shape index: {}]
  %s6 = inlined_call_operand.vmem [shape: bf16[32,1024], index: 6, kind: input, shape index: {}]
  %s7 = inlined_call_operand.vmem [shape: bf16[32,1024], index: 7, kind: input, shape index: {}]
  %s8 = inlined_call_operand.vmem [shape: f32[1,1024], index: 8, kind: input, shape index: {}]
  %s9 = inlined_call_operand.vmem [shape: bf16[1024,32], index: 9, kind: input, shape index: {}]
  %s10 = inlined_call_operand.vmem [shape: f32[1,32], index: 10, kind: input, shape index: {}]
  %s11 = inlined_call_operand.hbm [shape: f32[2,32], index: 11, kind: output, shape index: {}]
  %s12 = sld [smem:[#allocation0]]
  $region54: #{mega_forward.1} parent=0
    _
  %s14 = ssub.s32 1, %s12
  %s15 = scalar_select 0, %s14, %s12
  $region1: #{mega_forward.1} parent=0
    #allocation2 [shape = 'u8[1024]{0}', space=vmem, size = 0x400, scoped, tag = 'output window, operand 0, single buffered']
    #allocation3 [shape = 's32[1]{0}', space=sflag, size = 0x4, scoped, tag = 'scoped memory for mega_forward.1']
    %16 = vsyncpa [#allocation3], 0
    // Predicated region
    $region2: #{mega_forward.1} parent=1 // pred_check
      _
    $region3: #{mega_forward.1} parent=1 // pred_check_branch
      %18 = sbr.rel (0) target = $region5
    $region4: #{mega_forward.1} parent=1 // pred_region
      _
    $region5: #{mega_forward.1} parent=1 // pred_fallthru
      _
    // Predicated region
    $region6: #{mega_forward.1} parent=1 // pred_check
      _
    $region7: #{mega_forward.1} parent=1 // pred_check_branch
      %20 = sbr.rel (0) target = $region9
    $region8: #{mega_forward.1} parent=1 // pred_region
      _
    $region9: #{mega_forward.1} parent=1 // pred_fallthru
      _
    // Predicated region
    $region10: #{mega_forward.1} parent=1 // pred_check
      _
    $region11: #{mega_forward.1} parent=1 // pred_check_branch
      %22 = sbr.rel (0) target = $region13
    $region12: #{mega_forward.1} parent=1 // pred_region
      _
    $region13: #{mega_forward.1} parent=1 // pred_fallthru
      _
    // Predicated region
    $region14: #{mega_forward.1} parent=1 // pred_check
      _
    $region15: #{mega_forward.1} parent=1 // pred_check_branch
      %24 = sbr.rel (0) target = $region17
    $region16: #{mega_forward.1} parent=1 // pred_region
      _
    $region17: #{mega_forward.1} parent=1 // pred_fallthru
      _
    // Predicated region
    $region18: #{mega_forward.1} parent=1 // pred_check
      _
    $region19: #{mega_forward.1} parent=1 // pred_check_branch
      %26 = sbr.rel (0) target = $region21
    $region20: #{mega_forward.1} parent=1 // pred_region
      _
    $region21: #{mega_forward.1} parent=1 // pred_fallthru
      _
    // Predicated region
    $region22: #{mega_forward.1} parent=1 // pred_check
      _
    $region23: #{mega_forward.1} parent=1 // pred_check_branch
      %28 = sbr.rel (0) target = $region25
    $region24: #{mega_forward.1} parent=1 // pred_region
      _
    $region25: #{mega_forward.1} parent=1 // pred_fallthru
      _
    // Predicated region
    $region26: #{mega_forward.1} parent=1 // pred_check
      _
    $region27: #{mega_forward.1} parent=1 // pred_check_branch
      %30 = sbr.rel (0) target = $region29
    $region28: #{mega_forward.1} parent=1 // pred_region
      _
    $region29: #{mega_forward.1} parent=1 // pred_fallthru
      _
    // Predicated region
    $region30: #{mega_forward.1} parent=1 // pred_check
      _
    $region31: #{mega_forward.1} parent=1 // pred_check_branch
      %32 = sbr.rel (0) target = $region33
    $region32: #{mega_forward.1} parent=1 // pred_region
      _
    $region33: #{mega_forward.1} parent=1 // pred_fallthru
      _
    // Predicated region
    $region34: #{mega_forward.1} parent=1 // pred_check
      _
    $region35: #{mega_forward.1} parent=1 // pred_check_branch
      %34 = sbr.rel (0) target = $region37
    $region36: #{mega_forward.1} parent=1 // pred_region
      _
    $region37: #{mega_forward.1} parent=1 // pred_fallthru
      _
    // Predicated region
    $region38: #{mega_forward.1} parent=1 // pred_check
      _
    $region39: #{mega_forward.1} parent=1 // pred_check_branch
      %36 = sbr.rel (0) target = $region41
    $region40: #{mega_forward.1} parent=1 // pred_region
      _
    $region41: #{mega_forward.1} parent=1 // pred_fallthru
      _
    // Predicated region
    $region42: #{mega_forward.1} parent=1 // pred_check
      _
    $region43: #{mega_forward.1} parent=1 // pred_check_branch
      %38 = sbr.rel (0) target = $region45
    $region44: #{mega_forward.1} parent=1 // pred_region
      _
    $region45: #{mega_forward.1} parent=1 // pred_fallthru
      _
    %v40 = vld [vmem:[%s0] sm:$0x1]
    %v41 = vld [vmem:[%s2] sm:$0xff]
    %v42 = vld [vmem:[%s2 + $0x8] sm:$0xff]
    %v43 = vld [vmem:[%s2 + $0x10] sm:$0xff]
    %v44 = vld [vmem:[%s2 + $0x18] sm:$0xff]
    %v45 = vld [vmem:[%s2 + $0x20] sm:$0xff]
    %v46 = vld [vmem:[%s2 + $0x28] sm:$0xff]
    %v47 = vld [vmem:[%s2 + $0x30] sm:$0xff]
    %v48 = vld [vmem:[%s2 + $0x38] sm:$0xff]
    %v49 = vld [vmem:[%s2 + $0x40] sm:$0xff]
    %v50 = vld [vmem:[%s2 + $0x48] sm:$0xff]
    %v51 = vld [vmem:[%s2 + $0x50] sm:$0xff]
    %v52 = vld [vmem:[%s2 + $0x58] sm:$0xff]
    %v53 = vld [vmem:[%s2 + $0x60] sm:$0xff]
    %v54 = vld [vmem:[%s2 + $0x68] sm:$0xff]
    %v55 = vld [vmem:[%s2 + $0x70] sm:$0xff]
    %v56 = vld [vmem:[%s2 + $0x78] sm:$0xff]
    %v57 = vld [vmem:[%s3] sm:$0xff]
    %v59 = vlaneseq
    %v60 = vshrl.u32 %v59, 7
    %v61 = vsub.s32 0, %v60
    %v62 = vrot.slane %v57, %v61
    %v63 = vlaneseq
    %v64 = vshrl.u32 %v63, 7
    %v65 = vsub.s32 1, %v64
    %v66 = vrot.slane %v57, %v65
    %v67 = vlaneseq
    %v68 = vshrl.u32 %v67, 7
    %v69 = vsub.s32 2, %v68
    %v70 = vrot.slane %v57, %v69
    %v71 = vlaneseq
    %v72 = vshrl.u32 %v71, 7
    %v73 = vsub.s32 3, %v72
    %v74 = vrot.slane %v57, %v73
    %v75 = vlaneseq
    %v76 = vshrl.u32 %v75, 7
    %v77 = vsub.s32 4, %v76
    %v78 = vrot.slane %v57, %v77
    %v79 = vlaneseq
    %v80 = vshrl.u32 %v79, 7
    %v81 = vsub.s32 5, %v80
    %v82 = vrot.slane %v57, %v81
    %v83 = vlaneseq
    %v84 = vshrl.u32 %v83, 7
    %v85 = vsub.s32 6, %v84
    %v86 = vrot.slane %v57, %v85
    %v87 = vlaneseq
    %v88 = vshrl.u32 %v87, 7
    %v89 = vsub.s32 7, %v88
    %v90 = vrot.slane %v57, %v89
    %v115 = vunpack.c.l.b16 %v41
    %v116 = vunpack.c.h.b16 %v41
    %v117 = vunpack.c.l.b16 %v42
    %v118 = vunpack.c.h.b16 %v42
    %v119 = vunpack.c.l.b16 %v43
    %v120 = vunpack.c.h.b16 %v43
    %v121 = vunpack.c.l.b16 %v44
    %v122 = vunpack.c.h.b16 %v44
    %v123 = vunpack.c.l.b16 %v45
    %v124 = vunpack.c.h.b16 %v45
    %v125 = vunpack.c.l.b16 %v46
    %v126 = vunpack.c.h.b16 %v46
    %v127 = vunpack.c.l.b16 %v47
    %v128 = vunpack.c.h.b16 %v47
    %v129 = vunpack.c.l.b16 %v48
    %v130 = vunpack.c.h.b16 %v48
    %v131 = vunpack.c.l.b16 %v49
    %v132 = vunpack.c.h.b16 %v49
    %v133 = vunpack.c.l.b16 %v50
    %v134 = vunpack.c.h.b16 %v50
    %v135 = vunpack.c.l.b16 %v51
    %v136 = vunpack.c.h.b16 %v51
    %v137 = vunpack.c.l.b16 %v52
    %v138 = vunpack.c.h.b16 %v52
    %v139 = vunpack.c.l.b16 %v53
    %v140 = vunpack.c.h.b16 %v53
    %v141 = vunpack.c.l.b16 %v54
    %v142 = vunpack.c.h.b16 %v54
    %v143 = vunpack.c.l.b16 %v55
    %v144 = vunpack.c.h.b16 %v55
    %v145 = vunpack.c.l.b16 %v56
    %v146 = vunpack.c.h.b16 %v56
    %v147 = vpack.c.b16 %v123, %v115
    %v148 = vpack.c.b16 %v124, %v116
    %v149 = vpack.c.b16 %v125, %v117
    %v150 = vpack.c.b16 %v126, %v118
    %v151 = vpack.c.b16 %v127, %v119
    %v152 = vpack.c.b16 %v128, %v120
    %v153 = vpack.c.b16 %v129, %v121
    %v154 = vpack.c.b16 %v130, %v122
    %v155 = vpack.c.b16 %v139, %v131
    %v156 = vpack.c.b16 %v140, %v132
    %v157 = vpack.c.b16 %v141, %v133
    %v158 = vpack.c.b16 %v142, %v134
    %v159 = vpack.c.b16 %v143, %v135
    %v160 = vpack.c.b16 %v144, %v136
    %v161 = vpack.c.b16 %v145, %v137
    %v162 = vpack.c.b16 %v146, %v138
    %vm179 = vcmask 261120
    %v181 = vsel %vm179, %v40, 0
    %183 = vmatprep.subr.bf16.mxu0 %v148
    %184 = vmatpush1.bf16.msra.mxu0 %v147
    %185 = vmatprep.subr.bf16.mxu0 %v156
    %186 = vmatpush1.bf16.msra.mxu0 %v155
    %187 = vmatprep.subr.bf16.mxu0 0
    %188 = vmatpush1.bf16.msra.mxu0 0
    %189 = vmatprep.subr.bf16.mxu0 0
    %190 = vmatpush1.bf16.msra.mxu0 0
    %191 = vmatprep.subr.bf16.mxu0 0
    %192 = vmatpush1.bf16.msra.mxu0 0
    %193 = vmatprep.subr.bf16.mxu0 0
    %194 = vmatpush1.bf16.msra.mxu0 0
    %195 = vmatprep.subr.bf16.mxu0 0
    %196 = vmatpush1.bf16.msra.mxu0 0
    %197 = vmatprep.subr.bf16.mxu0 0
    %198 = vmatpush1.bf16.msra.mxu0 0
    %199 = vmatprep.subr.bf16.mxu0 0
    %200 = vmatpush1.bf16.msra.mxu0 0
    %201 = vmatprep.subr.bf16.mxu0 0
    %202 = vmatpush1.bf16.msra.mxu0 0
    %203 = vmatprep.subr.bf16.mxu0 0
    %204 = vmatpush1.bf16.msra.mxu0 0
    %205 = vmatprep.subr.bf16.mxu0 0
    %206 = vmatpush1.bf16.msra.mxu0 0
    %207 = vmatprep.subr.bf16.mxu0 0
    %208 = vmatpush1.bf16.msra.mxu0 0
    %209 = vmatprep.subr.bf16.mxu0 0
    %210 = vmatpush1.bf16.msra.mxu0 0
    %211 = vmatprep.subr.bf16.mxu0 0
    %212 = vmatpush1.bf16.msra.mxu0 0
    %213 = vmatprep.subr.bf16.mxu0 0
    %214 = vmatpush1.bf16.msra.mxu0 0
    %215 = vmatprep.mubr.bf16.mxu0 0
    %216 = vmatmul.mubr.bf16.gmra.mrb[0].mxu0 %v181
    %v217 = vpop.f32.mrb[0].mxu0
    %v218 = vadd.f32 %v62, %v217
    %v219 = vpop.f32.mrb[0].mxu0
    %v220 = vadd.f32 %v66, %v219
    %v221 = vpop.f32.mrb[0].mxu0
    %v222 = vpop.f32.mrb[0].mxu0
    %223 = vdwg.mxu0
    %224 = vmatprep.subr.bf16.mxu0 %v150
    %225 = vmatpush1.bf16.msra.mxu0 %v149
    %226 = vmatprep.subr.bf16.mxu0 %v158
    %227 = vmatpush1.bf16.msra.mxu0 %v157
    %228 = vmatprep.subr.bf16.mxu0 0
    %229 = vmatpush1.bf16.msra.mxu0 0
    %230 = vmatprep.subr.bf16.mxu0 0
    %231 = vmatpush1.bf16.msra.mxu0 0
    %232 = vmatprep.subr.bf16.mxu0 0
    %233 = vmatpush1.bf16.msra.mxu0 0
    %234 = vmatprep.subr.bf16.mxu0 0
    %235 = vmatpush1.bf16.msra.mxu0 0
    %236 = vmatprep.subr.bf16.mxu0 0
    %237 = vmatpush1.bf16.msra.mxu0 0
    %238 = vmatprep.subr.bf16.mxu0 0
    %239 = vmatpush1.bf16.msra.mxu0 0
    %240 = vmatprep.subr.bf16.mxu0 0
    %241 = vmatpush1.bf16.msra.mxu0 0
    %242 = vmatprep.subr.bf16.mxu0 0
    %243 = vmatpush1.bf16.msra.mxu0 0
    %244 = vmatprep.subr.bf16.mxu0 0
    %245 = vmatpush1.bf16.msra.mxu0 0
    %246 = vmatprep.subr.bf16.mxu0 0
    %247 = vmatpush1.bf16.msra.mxu0 0
    %248 = vmatprep.subr.bf16.mxu0 0
    %249 = vmatpush1.bf16.msra.mxu0 0
    %250 = vmatprep.subr.bf16.mxu0 0
    %251 = vmatpush1.bf16.msra.mxu0 0
    %252 = vmatprep.subr.bf16.mxu0 0
    %253 = vmatpush1.bf16.msra.mxu0 0
    %254 = vmatprep.subr.bf16.mxu0 0
    %255 = vmatpush1.bf16.msra.mxu0 0
    %256 = vmatprep.mubr.bf16.mxu0 0
    %257 = vmatmul.mubr.bf16.gmra.mrb[0].mxu0 %v181
    %v258 = vpop.f32.mrb[0].mxu0
    %v259 = vadd.f32 %v70, %v258
    %v260 = vpop.f32.mrb[0].mxu0
    %v261 = vadd.f32 %v74, %v260
    %v262 = vpop.f32.mrb[0].mxu0
    %v263 = vpop.f32.mrb[0].mxu0
    %264 = vdwg.mxu0
    %265 = vmatprep.subr.bf16.mxu0 %v152
    %266 = vmatpush1.bf16.msra.mxu0 %v151
    %267 = vmatprep.subr.bf16.mxu0 %v160
    %268 = vmatpush1.bf16.msra.mxu0 %v159
    %269 = vmatprep.subr.bf16.mxu0 0
    %270 = vmatpush1.bf16.msra.mxu0 0
    %271 = vmatprep.subr.bf16.mxu0 0
    %272 = vmatpush1.bf16.msra.mxu0 0
    %273 = vmatprep.subr.bf16.mxu0 0
    %274 = vmatpush1.bf16.msra.mxu0 0
    %275 = vmatprep.subr.bf16.mxu0 0
    %276 = vmatpush1.bf16.msra.mxu0 0
    %277 = vmatprep.subr.bf16.mxu0 0
    %278 = vmatpush1.bf16.msra.mxu0 0
    %279 = vmatprep.subr.bf16.mxu0 0
    %280 = vmatpush1.bf16.msra.mxu0 0
    %281 = vmatprep.subr.bf16.mxu0 0
    %282 = vmatpush1.bf16.msra.mxu0 0
    %283 = vmatprep.subr.bf16.mxu0 0
    %284 = vmatpush1.bf16.msra.mxu0 0
    %285 = vmatprep.subr.bf16.mxu0 0
    %286 = vmatpush1.bf16.msra.mxu0 0
    %287 = vmatprep.subr.bf16.mxu0 0
    %288 = vmatpush1.bf16.msra.mxu0 0
    %289 = vmatprep.subr.bf16.mxu0 0
    %290 = vmatpush1.bf16.msra.mxu0 0
    %291 = vmatprep.subr.bf16.mxu0 0
    %292 = vmatpush1.bf16.msra.mxu0 0
    %293 = vmatprep.subr.bf16.mxu0 0
    %294 = vmatpush1.bf16.msra.mxu0 0
    %295 = vmatprep.subr.bf16.mxu0 0
    %296 = vmatpush1.bf16.msra.mxu0 0
    %297 = vmatprep.mubr.bf16.mxu0 0
    %298 = vmatmul.mubr.bf16.gmra.mrb[0].mxu0 %v181
    %v299 = vpop.f32.mrb[0].mxu0
    %v300 = vadd.f32 %v78, %v299
    %v301 = vpop.f32.mrb[0].mxu0
    %v302 = vadd.f32 %v82, %v301
    %v303 = vpop.f32.mrb[0].mxu0
    %v304 = vpop.f32.mrb[0].mxu0
    %305 = vdwg.mxu0
    %306 = vmatprep.subr.bf16.mxu0 %v154
    %307 = vmatpush1.bf16.msra.mxu0 %v153
    %308 = vmatprep.subr.bf16.mxu0 %v162
    %309 = vmatpush1.bf16.msra.mxu0 %v161
    %310 = vmatprep.subr.bf16.mxu0 0
    %311 = vmatpush1.bf16.msra.mxu0 0
    %312 = vmatprep.subr.bf16.mxu0 0
    %313 = vmatpush1.bf16.msra.mxu0 0
    %314 = vmatprep.subr.bf16.mxu0 0
    %315 = vmatpush1.bf16.msra.mxu0 0
    %316 = vmatprep.subr.bf16.mxu0 0
    %317 = vmatpush1.bf16.msra.mxu0 0
    %318 = vmatprep.subr.bf16.mxu0 0
    %319 = vmatpush1.bf16.msra.mxu0 0
    %320 = vmatprep.subr.bf16.mxu0 0
    %321 = vmatpush1.bf16.msra.mxu0 0
    %322 = vmatprep.subr.bf16.mxu0 0
    %323 = vmatpush1.bf16.msra.mxu0 0
    %324 = vmatprep.subr.bf16.mxu0 0
    %325 = vmatpush1.bf16.msra.mxu0 0
    %326 = vmatprep.subr.bf16.mxu0 0
    %327 = vmatpush1.bf16.msra.mxu0 0
    %328 = vmatprep.subr.bf16.mxu0 0
    %329 = vmatpush1.bf16.msra.mxu0 0
    %330 = vmatprep.subr.bf16.mxu0 0
    %331 = vmatpush1.bf16.msra.mxu0 0
    %332 = vmatprep.subr.bf16.mxu0 0
    %333 = vmatpush1.bf16.msra.mxu0 0
    %334 = vmatprep.subr.bf16.mxu0 0
    %335 = vmatpush1.bf16.msra.mxu0 0
    %336 = vmatprep.subr.bf16.mxu0 0
    %337 = vmatpush1.bf16.msra.mxu0 0
    %338 = vmatprep.mubr.bf16.mxu0 0
    %339 = vmatmul.mubr.bf16.gmra.mrb[0].mxu0 %v181
    %v340 = vpop.f32.mrb[0].mxu0
    %v341 = vadd.f32 %v86, %v340
    %v342 = vpop.f32.mrb[0].mxu0
    %v343 = vadd.f32 %v90, %v342
    %v344 = vpop.f32.mrb[0].mxu0
    %v345 = vpop.f32.mrb[0].mxu0
    %346 = vdwg.mxu0
    %v347 = vmax.f32 %v218, 0.0
    %v348 = vmax.f32 %v220, 0.0
    %v349 = vmax.f32 %v259, 0.0
    %v350 = vmax.f32 %v261, 0.0
    %v351 = vmax.f32 %v300, 0.0
    %v352 = vmax.f32 %v302, 0.0
    %v353 = vmax.f32 %v341, 0.0
    %v354 = vmax.f32 %v343, 0.0
    %v355 = vpack.c.bf16 %v347, %v347
    %v356 = vpack.c.bf16 %v348, %v348
    %v357 = vpack.c.bf16 %v349, %v349
    %v358 = vpack.c.bf16 %v350, %v350
    %v359 = vpack.c.bf16 %v351, %v351
    %v360 = vpack.c.bf16 %v352, %v352
    %v361 = vpack.c.bf16 %v353, %v353
    %v362 = vpack.c.bf16 %v354, %v354
    %v363 = vld [vmem:[%s4] sm:$0xf]
    %v364 = vld [vmem:[%s4 + $0x4] sm:$0xf]
    %v365 = vld [vmem:[%s4 + $0x8] sm:$0xf]
    %v366 = vld [vmem:[%s4 + $0xc] sm:$0xf]
    %v367 = vld [vmem:[%s4 + $0x10] sm:$0xf]
    %v368 = vld [vmem:[%s4 + $0x14] sm:$0xf]
    %v369 = vld [vmem:[%s4 + $0x18] sm:$0xf]
    %v370 = vld [vmem:[%s4 + $0x1c] sm:$0xf]
    %v371 = vld [vmem:[%s4 + $0x20] sm:$0xf]
    %v372 = vld [vmem:[%s4 + $0x24] sm:$0xf]
    %v373 = vld [vmem:[%s4 + $0x28] sm:$0xf]
    %v374 = vld [vmem:[%s4 + $0x2c] sm:$0xf]
    %v375 = vld [vmem:[%s4 + $0x30] sm:$0xf]
    %v376 = vld [vmem:[%s4 + $0x34] sm:$0xf]
    %v377 = vld [vmem:[%s4 + $0x38] sm:$0xf]
    %v378 = vld [vmem:[%s4 + $0x3c] sm:$0xf]
    %v379 = vld [vmem:[%s4 + $0x40] sm:$0xf]
    %v380 = vld [vmem:[%s4 + $0x44] sm:$0xf]
    %v381 = vld [vmem:[%s4 + $0x48] sm:$0xf]
    %v382 = vld [vmem:[%s4 + $0x4c] sm:$0xf]
    %v383 = vld [vmem:[%s4 + $0x50] sm:$0xf]
    %v384 = vld [vmem:[%s4 + $0x54] sm:$0xf]
    %v385 = vld [vmem:[%s4 + $0x58] sm:$0xf]
    %v386 = vld [vmem:[%s4 + $0x5c] sm:$0xf]
    %v387 = vld [vmem:[%s4 + $0x60] sm:$0xf]
    %v388 = vld [vmem:[%s4 + $0x64] sm:$0xf]
    %v389 = vld [vmem:[%s4 + $0x68] sm:$0xf]
    %v390 = vld [vmem:[%s4 + $0x6c] sm:$0xf]
    %v391 = vld [vmem:[%s4 + $0x70] sm:$0xf]
    %v392 = vld [vmem:[%s4 + $0x74] sm:$0xf]
    %v393 = vld [vmem:[%s4 + $0x78] sm:$0xf]
    %v394 = vld [vmem:[%s4 + $0x7c] sm:$0xf]
    %v395 = vld [vmem:[%s4 + $0x80] sm:$0xf]
    %v396 = vld [vmem:[%s4 + $0x84] sm:$0xf]
    %v397 = vld [vmem:[%s4 + $0x88] sm:$0xf]
    %v398 = vld [vmem:[%s4 + $0x8c] sm:$0xf]
    %v399 = vld [vmem:[%s4 + $0x90] sm:$0xf]
    %v400 = vld [vmem:[%s4 + $0x94] sm:$0xf]
    %v401 = vld [vmem:[%s4 + $0x98] sm:$0xf]
    %v402 = vld [vmem:[%s4 + $0x9c] sm:$0xf]
    %v403 = vld [vmem:[%s4 + $0xa0] sm:$0xf]
    %v404 = vld [vmem:[%s4 + $0xa4] sm:$0xf]
    %v405 = vld [vmem:[%s4 + $0xa8] sm:$0xf]
    %v406 = vld [vmem:[%s4 + $0xac] sm:$0xf]
    %v407 = vld [vmem:[%s4 + $0xb0] sm:$0xf]
    %v408 = vld [vmem:[%s4 + $0xb4] sm:$0xf]
    %v409 = vld [vmem:[%s4 + $0xb8] sm:$0xf]
    %v410 = vld [vmem:[%s4 + $0xbc] sm:$0xf]
    %v411 = vld [vmem:[%s4 + $0xc0] sm:$0xf]
    %v412 = vld [vmem:[%s4 + $0xc4] sm:$0xf]
    %v413 = vld [vmem:[%s4 + $0xc8] sm:$0xf]
    %v414 = vld [vmem:[%s4 + $0xcc] sm:$0xf]
    %v415 = vld [vmem:[%s4 + $0xd0] sm:$0xf]
    %v416 = vld [vmem:[%s4 + $0xd4] sm:$0xf]
    %v417 = vld [vmem:[%s4 + $0xd8] sm:$0xf]
    %v418 = vld [vmem:[%s4 + $0xdc] sm:$0xf]
    %v419 = vld [vmem:[%s4 + $0xe0] sm:$0xf]
    %v420 = vld [vmem:[%s4 + $0xe4] sm:$0xf]
    %v421 = vld [vmem:[%s4 + $0xe8] sm:$0xf]
    %v422 = vld [vmem:[%s4 + $0xec] sm:$0xf]
    %v423 = vld [vmem:[%s4 + $0xf0] sm:$0xf]
    %v424 = vld [vmem:[%s4 + $0xf4] sm:$0xf]
    %v425 = vld [vmem:[%s4 + $0xf8] sm:$0xf]
    %v426 = vld [vmem:[%s4 + $0xfc] sm:$0xf]
    %v427 = vld [vmem:[%s4 + $0x100] sm:$0xf]
    %v428 = vld [vmem:[%s4 + $0x104] sm:$0xf]
    %v429 = vld [vmem:[%s4 + $0x108] sm:$0xf]
    %v430 = vld [vmem:[%s4 + $0x10c] sm:$0xf]
    %v431 = vld [vmem:[%s4 + $0x110] sm:$0xf]
    %v432 = vld [vmem:[%s4 + $0x114] sm:$0xf]
    %v433 = vld [vmem:[%s4 + $0x118] sm:$0xf]
    %v434 = vld [vmem:[%s4 + $0x11c] sm:$0xf]
    %v435 = vld [vmem:[%s4 + $0x120] sm:$0xf]
    %v436 = vld [vmem:[%s4 + $0x124] sm:$0xf]
    %v437 = vld [vmem:[%s4 + $0x128] sm:$0xf]
    %v438 = vld [vmem:[%s4 + $0x12c] sm:$0xf]
    %v439 = vld [vmem:[%s4 + $0x130] sm:$0xf]
    %v440 = vld [vmem:[%s4 + $0x134] sm:$0xf]
    %v441 = vld [vmem:[%s4 + $0x138] sm:$0xf]
    %v442 = vld [vmem:[%s4 + $0x13c] sm:$0xf]
    %v443 = vld [vmem:[%s4 + $0x140] sm:$0xf]
    %v444 = vld [vmem:[%s4 + $0x144] sm:$0xf]
    %v445 = vld [vmem:[%s4 + $0x148] sm:$0xf]
    %v446 = vld [vmem:[%s4 + $0x14c] sm:$0xf]
    %v447 = vld [vmem:[%s4 + $0x150] sm:$0xf]
    %v448 = vld [vmem:[%s4 + $0x154] sm:$0xf]
    %v449 = vld [vmem:[%s4 + $0x158] sm:$0xf]
    %v450 = vld [vmem:[%s4 + $0x15c] sm:$0xf]
    %v451 = vld [vmem:[%s4 + $0x160] sm:$0xf]
    %v452 = vld [vmem:[%s4 + $0x164] sm:$0xf]
    %v453 = vld [vmem:[%s4 + $0x168] sm:$0xf]
    %v454 = vld [vmem:[%s4 + $0x16c] sm:$0xf]
    %v455 = vld [vmem:[%s4 + $0x170] sm:$0xf]
    %v456 = vld [vmem:[%s4 + $0x174] sm:$0xf]
    %v457 = vld [vmem:[%s4 + $0x178] sm:$0xf]
    %v458 = vld [vmem:[%s4 + $0x17c] sm:$0xf]
    %v459 = vld [vmem:[%s4 + $0x180] sm:$0xf]
    %v460 = vld [vmem:[%s4 + $0x184] sm:$0xf]
    %v461 = vld [vmem:[%s4 + $0x188] sm:$0xf]
    %v462 = vld [vmem:[%s4 + $0x18c] sm:$0xf]
    %v463 = vld [vmem:[%s4 + $0x190] sm:$0xf]
    %v464 = vld [vmem:[%s4 + $0x194] sm:$0xf]
    %v465 = vld [vmem:[%s4 + $0x198] sm:$0xf]
    %v466 = vld [vmem:[%s4 + $0x19c] sm:$0xf]
    %v467 = vld [vmem:[%s4 + $0x1a0] sm:$0xf]
    %v468 = vld [vmem:[%s4 + $0x1a4] sm:$0xf]
    %v469 = vld [vmem:[%s4 + $0x1a8] sm:$0xf]
    %v470 = vld [vmem:[%s4 + $0x1ac] sm:$0xf]
    %v471 = vld [vmem:[%s4 + $0x1b0] sm:$0xf]
    %v472 = vld [vmem:[%s4 + $0x1b4] sm:$0xf]
    %v473 = vld [vmem:[%s4 + $0x1b8] sm:$0xf]
    %v474 = vld [vmem:[%s4 + $0x1bc] sm:$0xf]
    %v475 = vld [vmem:[%s4 + $0x1c0] sm:$0xf]
    %v476 = vld [vmem:[%s4 + $0x1c4] sm:$0xf]
    %v477 = vld [vmem:[%s4 + $0x1c8] sm:$0xf]
    %v478 = vld [vmem:[%s4 + $0x1cc] sm:$0xf]
    %v479 = vld [vmem:[%s4 + $0x1d0] sm:$0xf]
    %v480 = vld [vmem:[%s4 + $0x1d4] sm:$0xf]
    %v481 = vld [vmem:[%s4 + $0x1d8] sm:$0xf]
    %v482 = vld [vmem:[%s4 + $0x1dc] sm:$0xf]
    %v483 = vld [vmem:[%s4 + $0x1e0] sm:$0xf]
    %v484 = vld [vmem:[%s4 + $0x1e4] sm:$0xf]
    %v485 = vld [vmem:[%s4 + $0x1e8] sm:$0xf]
    %v486 = vld [vmem:[%s4 + $0x1ec] sm:$0xf]
    %v487 = vld [vmem:[%s4 + $0x1f0] sm:$0xf]
    %v488 = vld [vmem:[%s4 + $0x1f4] sm:$0xf]
    %v489 = vld [vmem:[%s4 + $0x1f8] sm:$0xf]
    %v490 = vld [vmem:[%s4 + $0x1fc] sm:$0xf]
    %v491 = vld [vmem:[%s5] sm:$0x1]
    %v493 = vlaneseq
    %v494 = vshrl.u32 %v493, 7
    %v495 = vsub.s32 0, %v494
    %v496 = vrot.slane %v491, %v495
    %v626 = vunpack.c.l.b16 %v363
    %v627 = vunpack.c.l.b16 %v364
    %v628 = vunpack.c.l.b16 %v365
    %v629 = vunpack.c.l.b16 %v366
    %v630 = vunpack.c.l.b16 %v367
    %v631 = vunpack.c.l.b16 %v368
    %v632 = vunpack.c.l.b16 %v369
    %v633 = vunpack.c.l.b16 %v370
    %v634 = vunpack.c.l.b16 %v371
    %v635 = vunpack.c.l.b16 %v372
    %v636 = vunpack.c.l.b16 %v373
    %v637 = vunpack.c.l.b16 %v374
    %v638 = vunpack.c.l.b16 %v375
    %v639 = vunpack.c.l.b16 %v376
    %v640 = vunpack.c.l.b16 %v377
    %v641 = vunpack.c.l.b16 %v378
    %v642 = vunpack.c.l.b16 %v379
    %v643 = vunpack.c.l.b16 %v380
    %v644 = vunpack.c.l.b16 %v381
    %v645 = vunpack.c.l.b16 %v382
    %v646 = vunpack.c.l.b16 %v383
    %v647 = vunpack.c.l.b16 %v384
    %v648 = vunpack.c.l.b16 %v385
    %v649 = vunpack.c.l.b16 %v386
    %v650 = vunpack.c.l.b16 %v387
    %v651 = vunpack.c.l.b16 %v388
    %v652 = vunpack.c.l.b16 %v389
    %v653 = vunpack.c.l.b16 %v390
    %v654 = vunpack.c.l.b16 %v391
    %v655 = vunpack.c.l.b16 %v392
    %v656 = vunpack.c.l.b16 %v393
    %v657 = vunpack.c.l.b16 %v394
    %v658 = vunpack.c.l.b16 %v395
    %v659 = vunpack.c.l.b16 %v396
    %v660 = vunpack.c.l.b16 %v397
    %v661 = vunpack.c.l.b16 %v398
    %v662 = vunpack.c.l.b16 %v399
    %v663 = vunpack.c.l.b16 %v400
    %v664 = vunpack.c.l.b16 %v401
    %v665 = vunpack.c.l.b16 %v402
    %v666 = vunpack.c.l.b16 %v403
    %v667 = vunpack.c.l.b16 %v404
    %v668 = vunpack.c.l.b16 %v405
    %v669 = vunpack.c.l.b16 %v406
    %v670 = vunpack.c.l.b16 %v407
    %v671 = vunpack.c.l.b16 %v408
    %v672 = vunpack.c.l.b16 %v409
    %v673 = vunpack.c.l.b16 %v410
    %v674 = vunpack.c.l.b16 %v411
    %v675 = vunpack.c.l.b16 %v412
    %v676 = vunpack.c.l.b16 %v413
    %v677 = vunpack.c.l.b16 %v414
    %v678 = vunpack.c.l.b16 %v415
    %v679 = vunpack.c.l.b16 %v416
    %v680 = vunpack.c.l.b16 %v417
    %v681 = vunpack.c.l.b16 %v418
    %v682 = vunpack.c.l.b16 %v419
    %v683 = vunpack.c.l.b16 %v420
    %v684 = vunpack.c.l.b16 %v421
    %v685 = vunpack.c.l.b16 %v422
    %v686 = vunpack.c.l.b16 %v423
    %v687 = vunpack.c.l.b16 %v424
    %v688 = vunpack.c.l.b16 %v425
    %v689 = vunpack.c.l.b16 %v426
    %v690 = vunpack.c.l.b16 %v427
    %v691 = vunpack.c.l.b16 %v428
    %v692 = vunpack.c.l.b16 %v429
    %v693 = vunpack.c.l.b16 %v430
    %v694 = vunpack.c.l.b16 %v431
    %v695 = vunpack.c.l.b16 %v432
    %v696 = vunpack.c.l.b16 %v433
    %v697 = vunpack.c.l.b16 %v434
    %v698 = vunpack.c.l.b16 %v435
    %v699 = vunpack.c.l.b16 %v436
    %v700 = vunpack.c.l.b16 %v437
    %v701 = vunpack.c.l.b16 %v438
    %v702 = vunpack.c.l.b16 %v439
    %v703 = vunpack.c.l.b16 %v440
    %v704 = vunpack.c.l.b16 %v441
    %v705 = vunpack.c.l.b16 %v442
    %v706 = vunpack.c.l.b16 %v443
    %v707 = vunpack.c.l.b16 %v444
    %v708 = vunpack.c.l.b16 %v445
    %v709 = vunpack.c.l.b16 %v446
    %v710 = vunpack.c.l.b16 %v447
    %v711 = vunpack.c.l.b16 %v448
    %v712 = vunpack.c.l.b16 %v449
    %v713 = vunpack.c.l.b16 %v450
    %v714 = vunpack.c.l.b16 %v451
    %v715 = vunpack.c.l.b16 %v452
    %v716 = vunpack.c.l.b16 %v453
    %v717 = vunpack.c.l.b16 %v454
    %v718 = vunpack.c.l.b16 %v455
    %v719 = vunpack.c.l.b16 %v456
    %v720 = vunpack.c.l.b16 %v457
    %v721 = vunpack.c.l.b16 %v458
    %v722 = vunpack.c.l.b16 %v459
    %v723 = vunpack.c.l.b16 %v460
    %v724 = vunpack.c.l.b16 %v461
    %v725 = vunpack.c.l.b16 %v462
    %v726 = vunpack.c.l.b16 %v463
    %v727 = vunpack.c.l.b16 %v464
    %v728 = vunpack.c.l.b16 %v465
    %v729 = vunpack.c.l.b16 %v466
    %v730 = vunpack.c.l.b16 %v467
    %v731 = vunpack.c.l.b16 %v468
    %v732 = vunpack.c.l.b16 %v469
    %v733 = vunpack.c.l.b16 %v470
    %v734 = vunpack.c.l.b16 %v471
    %v735 = vunpack.c.l.b16 %v472
    %v736 = vunpack.c.l.b16 %v473
    %v737 = vunpack.c.l.b16 %v474
    %v738 = vunpack.c.l.b16 %v475
    %v739 = vunpack.c.l.b16 %v476
    %v740 = vunpack.c.l.b16 %v477
    %v741 = vunpack.c.l.b16 %v478
    %v742 = vunpack.c.l.b16 %v479
    %v743 = vunpack.c.l.b16 %v480
    %v744 = vunpack.c.l.b16 %v481
    %v745 = vunpack.c.l.b16 %v482
    %v746 = vunpack.c.l.b16 %v483
    %v747 = vunpack.c.l.b16 %v484
    %v748 = vunpack.c.l.b16 %v485
    %v749 = vunpack.c.l.b16 %v486
    %v750 = vunpack.c.l.b16 %v487
    %v751 = vunpack.c.l.b16 %v488
    %v752 = vunpack.c.l.b16 %v489
    %v753 = vunpack.c.l.b16 %v490
    %v754 = vpack.c.b16 %v627, %v626
    %v755 = vpack.c.b16 %v629, %v628
    %v756 = vpack.c.b16 %v631, %v630
    %v757 = vpack.c.b16 %v633, %v632
    %v758 = vpack.c.b16 %v635, %v634
    %v759 = vpack.c.b16 %v637, %v636
    %v760 = vpack.c.b16 %v639, %v638
    %v761 = vpack.c.b16 %v641, %v640
    %v762 = vpack.c.b16 %v643, %v642
    %v763 = vpack.c.b16 %v645, %v644
    %v764 = vpack.c.b16 %v647, %v646
    %v765 = vpack.c.b16 %v649, %v648
    %v766 = vpack.c.b16 %v651, %v650
    %v767 = vpack.c.b16 %v653, %v652
    %v768 = vpack.c.b16 %v655, %v654
    %v769 = vpack.c.b16 %v657, %v656
    %v770 = vpack.c.b16 %v659, %v658
    %v771 = vpack.c.b16 %v661, %v660
    %v772 = vpack.c.b16 %v663, %v662
    %v773 = vpack.c.b16 %v665, %v664
    %v774 = vpack.c.b16 %v667, %v666
    %v775 = vpack.c.b16 %v669, %v668
    %v776 = vpack.c.b16 %v671, %v670
    %v777 = vpack.c.b16 %v673, %v672
    %v778 = vpack.c.b16 %v675, %v674
    %v779 = vpack.c.b16 %v677, %v676
    %v780 = vpack.c.b16 %v679, %v678
    %v781 = vpack.c.b16 %v681, %v680
    %v782 = vpack.c.b16 %v683, %v682
    %v783 = vpack.c.b16 %v685, %v684
    %v784 = vpack.c.b16 %v687, %v686
    %v785 = vpack.c.b16 %v689, %v688
    %v786 = vpack.c.b16 %v691, %v690
    %v787 = vpack.c.b16 %v693, %v692
    %v788 = vpack.c.b16 %v695, %v694
    %v789 = vpack.c.b16 %v697, %v696
    %v790 = vpack.c.b16 %v699, %v698
    %v791 = vpack.c.b16 %v701, %v700
    %v792 = vpack.c.b16 %v703, %v702
    %v793 = vpack.c.b16 %v705, %v704
    %v794 = vpack.c.b16 %v707, %v706
    %v795 = vpack.c.b16 %v709, %v708
    %v796 = vpack.c.b16 %v711, %v710
    %v797 = vpack.c.b16 %v713, %v712
    %v798 = vpack.c.b16 %v715, %v714
    %v799 = vpack.c.b16 %v717, %v716
    %v800 = vpack.c.b16 %v719, %v718
    %v801 = vpack.c.b16 %v721, %v720
    %v802 = vpack.c.b16 %v723, %v722
    %v803 = vpack.c.b16 %v725, %v724
    %v804 = vpack.c.b16 %v727, %v726
    %v805 = vpack.c.b16 %v729, %v728
    %v806 = vpack.c.b16 %v731, %v730
    %v807 = vpack.c.b16 %v733, %v732
    %v808 = vpack.c.b16 %v735, %v734
    %v809 = vpack.c.b16 %v737, %v736
    %v810 = vpack.c.b16 %v739, %v738
    %v811 = vpack.c.b16 %v741, %v740
    %v812 = vpack.c.b16 %v743, %v742
    %v813 = vpack.c.b16 %v745, %v744
    %v814 = vpack.c.b16 %v747, %v746
    %v815 = vpack.c.b16 %v749, %v748
    %v816 = vpack.c.b16 %v751, %v750
    %v817 = vpack.c.b16 %v753, %v752
    %882 = vmatprep.subr.bf16.mxu0 0
    %883 = vmatpush1.bf16.msra.mxu0 %v754
    %884 = vmatprep.subr.bf16.mxu0 0
    %885 = vmatpush1.bf16.msra.mxu0 %v755
    %886 = vmatprep.subr.bf16.mxu0 0
    %887 = vmatpush1.bf16.msra.mxu0 %v756
    %888 = vmatprep.subr.bf16.mxu0 0
    %889 = vmatpush1.bf16.msra.mxu0 %v757
    %890 = vmatprep.subr.bf16.mxu0 0
    %891 = vmatpush1.bf16.msra.mxu0 %v758
    %892 = vmatprep.subr.bf16.mxu0 0
    %893 = vmatpush1.bf16.msra.mxu0 %v759
    %894 = vmatprep.subr.bf16.mxu0 0
    %895 = vmatpush1.bf16.msra.mxu0 %v760
    %896 = vmatprep.subr.bf16.mxu0 0
    %897 = vmatpush1.bf16.msra.mxu0 %v761
    %898 = vmatprep.subr.bf16.mxu0 0
    %899 = vmatpush1.bf16.msra.mxu0 %v762
    %900 = vmatprep.subr.bf16.mxu0 0
    %901 = vmatpush1.bf16.msra.mxu0 %v763
    %902 = vmatprep.subr.bf16.mxu0 0
    %903 = vmatpush1.bf16.msra.mxu0 %v764
    %904 = vmatprep.subr.bf16.mxu0 0
    %905 = vmatpush1.bf16.msra.mxu0 %v765
    %906 = vmatprep.subr.bf16.mxu0 0
    %907 = vmatpush1.bf16.msra.mxu0 %v766
    %908 = vmatprep.subr.bf16.mxu0 0
    %909 = vmatpush1.bf16.msra.mxu0 %v767
    %910 = vmatprep.subr.bf16.mxu0 0
    %911 = vmatpush1.bf16.msra.mxu0 %v768
    %912 = vmatprep.subr.bf16.mxu0 0
    %913 = vmatpush1.bf16.msra.mxu0 %v769
    %914 = vmatprep.mubr.bf16.mxu0 %v356
    %915 = vmatmul.mubr.bf16.gmra.mrb[0].mxu0 %v355
    %v916 = vpop.f32.mrb[0].mxu0
    %v917 = vadd.f32 %v496, %v916
    %v918 = vpop.f32.mrb[0].mxu0
    %v919 = vpop.f32.mrb[0].mxu0
    %v920 = vpop.f32.mrb[0].mxu0
    %921 = vdwg.mxu0
    %922 = vmatprep.subr.bf16.mxu0 0
    %923 = vmatpush1.bf16.msra.mxu0 %v770
    %924 = vmatprep.subr.bf16.mxu0 0
    %925 = vmatpush1.bf16.msra.mxu0 %v771
    %926 = vmatprep.subr.bf16.mxu0 0
    %927 = vmatpush1.bf16.msra.mxu0 %v772
    %928 = vmatprep.subr.bf16.mxu0 0
    %929 = vmatpush1.bf16.msra.mxu0 %v773
    %930 = vmatprep.subr.bf16.mxu0 0
    %931 = vmatpush1.bf16.msra.mxu0 %v774
    %932 = vmatprep.subr.bf16.mxu0 0
    %933 = vmatpush1.bf16.msra.mxu0 %v775
    %934 = vmatprep.subr.bf16.mxu0 0
    %935 = vmatpush1.bf16.msra.mxu0 %v776
    %936 = vmatprep.subr.bf16.mxu0 0
    %937 = vmatpush1.bf16.msra.mxu0 %v777
    %938 = vmatprep.subr.bf16.mxu0 0
    %939 = vmatpush1.bf16.msra.mxu0 %v778
    %940 = vmatprep.subr.bf16.mxu0 0
    %941 = vmatpush1.bf16.msra.mxu0 %v779
    %942 = vmatprep.subr.bf16.mxu0 0
    %943 = vmatpush1.bf16.msra.mxu0 %v780
    %944 = vmatprep.subr.bf16.mxu0 0
    %945 = vmatpush1.bf16.msra.mxu0 %v781
    %946 = vmatprep.subr.bf16.mxu0 0
    %947 = vmatpush1.bf16.msra.mxu0 %v782
    %948 = vmatprep.subr.bf16.mxu0 0
    %949 = vmatpush1.bf16.msra.mxu0 %v783
    %950 = vmatprep.subr.bf16.mxu0 0
    %951 = vmatpush1.bf16.msra.mxu0 %v784
    %952 = vmatprep.subr.bf16.mxu0 0
    %953 = vmatpush1.bf16.msra.mxu0 %v785
    %954 = vmatprep.mubr.bf16.mxu0 %v358
    %955 = vmatmul.mubr.bf16.gmra.mrb[0].mxu0 %v357
    %v956 = vpop.f32.mrb[0].mxu0
    %v957 = vadd.f32 %v917, %v956
    %v958 = vpop.f32.mrb[0].mxu0
    %v959 = vpop.f32.mrb[0].mxu0
    %v960 = vpop.f32.mrb[0].mxu0
    %961 = vdwg.mxu0
    %962 = vmatprep.subr.bf16.mxu0 0
    %963 = vmatpush1.bf16.msra.mxu0 %v786
    %964 = vmatprep.subr.bf16.mxu0 0
    %965 = vmatpush1.bf16.msra.mxu0 %v787
    %966 = vmatprep.subr.bf16.mxu0 0
    %967 = vmatpush1.bf16.msra.mxu0 %v788
    %968 = vmatprep.subr.bf16.mxu0 0
    %969 = vmatpush1.bf16.msra.mxu0 %v789
    %970 = vmatprep.subr.bf16.mxu0 0
    %971 = vmatpush1.bf16.msra.mxu0 %v790
    %972 = vmatprep.subr.bf16.mxu0 0
    %973 = vmatpush1.bf16.msra.mxu0 %v791
    %974 = vmatprep.subr.bf16.mxu0 0
    %975 = vmatpush1.bf16.msra.mxu0 %v792
    %976 = vmatprep.subr.bf16.mxu0 0
    %977 = vmatpush1.bf16.msra.mxu0 %v793
    %978 = vmatprep.subr.bf16.mxu0 0
    %979 = vmatpush1.bf16.msra.mxu0 %v794
    %980 = vmatprep.subr.bf16.mxu0 0
    %981 = vmatpush1.bf16.msra.mxu0 %v795
    %982 = vmatprep.subr.bf16.mxu0 0
    %983 = vmatpush1.bf16.msra.mxu0 %v796
    %984 = vmatprep.subr.bf16.mxu0 0
    %985 = vmatpush1.bf16.msra.mxu0 %v797
    %986 = vmatprep.subr.bf16.mxu0 0
    %987 = vmatpush1.bf16.msra.mxu0 %v798
    %988 = vmatprep.subr.bf16.mxu0 0
    %989 = vmatpush1.bf16.msra.mxu0 %v799
    %990 = vmatprep.subr.bf16.mxu0 0
    %991 = vmatpush1.bf16.msra.mxu0 %v800
    %992 = vmatprep.subr.bf16.mxu0 0
    %993 = vmatpush1.bf16.msra.mxu0 %v801
    %994 = vmatprep.mubr.bf16.mxu0 %v360
    %995 = vmatmul.mubr.bf16.gmra.mrb[0].mxu0 %v359
    %v996 = vpop.f32.mrb[0].mxu0
    %v997 = vadd.f32 %v957, %v996
    %v998 = vpop.f32.mrb[0].mxu0
    %v999 = vpop.f32.mrb[0].mxu0
    %v1000 = vpop.f32.mrb[0].mxu0
    %1001 = vdwg.mxu0
    %1002 = vmatprep.subr.bf16.mxu0 0
    %1003 = vmatpush1.bf16.msra.mxu0 %v802
    %1004 = vmatprep.subr.bf16.mxu0 0
    %1005 = vmatpush1.bf16.msra.mxu0 %v803
    %1006 = vmatprep.subr.bf16.mxu0 0
    %1007 = vmatpush1.bf16.msra.mxu0 %v804
    %1008 = vmatprep.subr.bf16.mxu0 0
    %1009 = vmatpush1.bf16.msra.mxu0 %v805
    %1010 = vmatprep.subr.bf16.mxu0 0
    %1011 = vmatpush1.bf16.msra.mxu0 %v806
    %1012 = vmatprep.subr.bf16.mxu0 0
    %1013 = vmatpush1.bf16.msra.mxu0 %v807
    %1014 = vmatprep.subr.bf16.mxu0 0
    %1015 = vmatpush1.bf16.msra.mxu0 %v808
    %1016 = vmatprep.subr.bf16.mxu0 0
    %1017 = vmatpush1.bf16.msra.mxu0 %v809
    %1018 = vmatprep.subr.bf16.mxu0 0
    %1019 = vmatpush1.bf16.msra.mxu0 %v810
    %1020 = vmatprep.subr.bf16.mxu0 0
    %1021 = vmatpush1.bf16.msra.mxu0 %v811
    %1022 = vmatprep.subr.bf16.mxu0 0
    %1023 = vmatpush1.bf16.msra.mxu0 %v812
    %1024 = vmatprep.subr.bf16.mxu0 0
    %1025 = vmatpush1.bf16.msra.mxu0 %v813
    %1026 = vmatprep.subr.bf16.mxu0 0
    %1027 = vmatpush1.bf16.msra.mxu0 %v814
    %1028 = vmatprep.subr.bf16.mxu0 0
    %1029 = vmatpush1.bf16.msra.mxu0 %v815
    %1030 = vmatprep.subr.bf16.mxu0 0
    %1031 = vmatpush1.bf16.msra.mxu0 %v816
    %1032 = vmatprep.subr.bf16.mxu0 0
    %1033 = vmatpush1.bf16.msra.mxu0 %v817
    %1034 = vmatprep.mubr.bf16.mxu0 %v362
    %1035 = vmatmul.mubr.bf16.gmra.mrb[0].mxu0 %v361
    %v1036 = vpop.f32.mrb[0].mxu0
    %v1037 = vadd.f32 %v997, %v1036
    %v1038 = vpop.f32.mrb[0].mxu0
    %v1039 = vpop.f32.mrb[0].mxu0
    %v1040 = vpop.f32.mrb[0].mxu0
    %1041 = vdwg.mxu0
    %v1042 = vpack.c.bf16 %v1037, %v1037
    %v1043 = vld [vmem:[%s6] sm:$0xff]
    %v1044 = vld [vmem:[%s6 + $0x8] sm:$0xff]
    %v1045 = vld [vmem:[%s6 + $0x10] sm:$0xff]
    %v1046 = vld [vmem:[%s6 + $0x18] sm:$0xff]
    %v1047 = vld [vmem:[%s6 + $0x20] sm:$0xff]
    %v1048 = vld [vmem:[%s6 + $0x28] sm:$0xff]
    %v1049 = vld [vmem:[%s6 + $0x30] sm:$0xff]
    %v1050 = vld [vmem:[%s6 + $0x38] sm:$0xff]
    %v1051 = vld [vmem:[%s6 + $0x40] sm:$0xff]
    %v1052 = vld [vmem:[%s6 + $0x48] sm:$0xff]
    %v1053 = vld [vmem:[%s6 + $0x50] sm:$0xff]
    %v1054 = vld [vmem:[%s6 + $0x58] sm:$0xff]
    %v1055 = vld [vmem:[%s6 + $0x60] sm:$0xff]
    %v1056 = vld [vmem:[%s6 + $0x68] sm:$0xff]
    %v1057 = vld [vmem:[%s6 + $0x70] sm:$0xff]
    %v1058 = vld [vmem:[%s6 + $0x78] sm:$0xff]
    %v1059 = vld [vmem:[%s1] sm:$0x1]
    %v1060 = vld [vmem:[%s7] sm:$0xff]
    %v1061 = vld [vmem:[%s7 + $0x8] sm:$0xff]
    %v1062 = vld [vmem:[%s7 + $0x10] sm:$0xff]
    %v1063 = vld [vmem:[%s7 + $0x18] sm:$0xff]
    %v1064 = vld [vmem:[%s7 + $0x20] sm:$0xff]
    %v1065 = vld [vmem:[%s7 + $0x28] sm:$0xff]
    %v1066 = vld [vmem:[%s7 + $0x30] sm:$0xff]
    %v1067 = vld [vmem:[%s7 + $0x38] sm:$0xff]
    %v1068 = vld [vmem:[%s7 + $0x40] sm:$0xff]
    %v1069 = vld [vmem:[%s7 + $0x48] sm:$0xff]
    %v1070 = vld [vmem:[%s7 + $0x50] sm:$0xff]
    %v1071 = vld [vmem:[%s7 + $0x58] sm:$0xff]
    %v1072 = vld [vmem:[%s7 + $0x60] sm:$0xff]
    %v1073 = vld [vmem:[%s7 + $0x68] sm:$0xff]
    %v1074 = vld [vmem:[%s7 + $0x70] sm:$0xff]
    %v1075 = vld [vmem:[%s7 + $0x78] sm:$0xff]
    %v1092 = vunpack.c.l.b16 %v1060
    %v1093 = vunpack.c.h.b16 %v1060
    %v1094 = vunpack.c.l.b16 %v1061
    %v1095 = vunpack.c.h.b16 %v1061
    %v1096 = vunpack.c.l.b16 %v1062
    %v1097 = vunpack.c.h.b16 %v1062
    %v1098 = vunpack.c.l.b16 %v1063
    %v1099 = vunpack.c.h.b16 %v1063
    %v1100 = vunpack.c.l.b16 %v1064
    %v1101 = vunpack.c.h.b16 %v1064
    %v1102 = vunpack.c.l.b16 %v1065
    %v1103 = vunpack.c.h.b16 %v1065
    %v1104 = vunpack.c.l.b16 %v1066
    %v1105 = vunpack.c.h.b16 %v1066
    %v1106 = vunpack.c.l.b16 %v1067
    %v1107 = vunpack.c.h.b16 %v1067
    %v1108 = vunpack.c.l.b16 %v1068
    %v1109 = vunpack.c.h.b16 %v1068
    %v1110 = vunpack.c.l.b16 %v1069
    %v1111 = vunpack.c.h.b16 %v1069
    %v1112 = vunpack.c.l.b16 %v1070
    %v1113 = vunpack.c.h.b16 %v1070
    %v1114 = vunpack.c.l.b16 %v1071
    %v1115 = vunpack.c.h.b16 %v1071
    %v1116 = vunpack.c.l.b16 %v1072
    %v1117 = vunpack.c.h.b16 %v1072
    %v1118 = vunpack.c.l.b16 %v1073
    %v1119 = vunpack.c.h.b16 %v1073
    %v1120 = vunpack.c.l.b16 %v1074
    %v1121 = vunpack.c.h.b16 %v1074
    %v1122 = vunpack.c.l.b16 %v1075
    %v1123 = vunpack.c.h.b16 %v1075
    %v1124 = vpack.c.b16 %v1100, %v1092
    %v1125 = vpack.c.b16 %v1101, %v1093
    %v1126 = vpack.c.b16 %v1102, %v1094
    %v1127 = vpack.c.b16 %v1103, %v1095
    %v1128 = vpack.c.b16 %v1104, %v1096
    %v1129 = vpack.c.b16 %v1105, %v1097
    %v1130 = vpack.c.b16 %v1106, %v1098
    %v1131 = vpack.c.b16 %v1107, %v1099
    %v1132 = vpack.c.b16 %v1116, %v1108
    %v1133 = vpack.c.b16 %v1117, %v1109
    %v1134 = vpack.c.b16 %v1118, %v1110
    %v1135 = vpack.c.b16 %v1119, %v1111
    %v1136 = vpack.c.b16 %v1120, %v1112
    %v1137 = vpack.c.b16 %v1121, %v1113
    %v1138 = vpack.c.b16 %v1122, %v1114
    %v1139 = vpack.c.b16 %v1123, %v1115
    %v1157 = vsel %vm179, %v1059, 0
    %1159 = vmatprep.subr.bf16.mxu0 %v1125
    %1160 = vmatpush1.bf16.msra.mxu0 %v1124
    %1161 = vmatprep.subr.bf16.mxu0 %v1133
    %1162 = vmatpush1.bf16.msra.mxu0 %v1132
    %1163 = vmatprep.subr.bf16.mxu0 0
    %1164 = vmatpush1.bf16.msra.mxu0 0
    %1165 = vmatprep.subr.bf16.mxu0 0
    %1166 = vmatpush1.bf16.msra.mxu0 0
    %1167 = vmatprep.subr.bf16.mxu0 0
    %1168 = vmatpush1.bf16.msra.mxu0 0
    %1169 = vmatprep.subr.bf16.mxu0 0
    %1170 = vmatpush1.bf16.msra.mxu0 0
    %1171 = vmatprep.subr.bf16.mxu0 0
    %1172 = vmatpush1.bf16.msra.mxu0 0
    %1173 = vmatprep.subr.bf16.mxu0 0
    %1174 = vmatpush1.bf16.msra.mxu0 0
    %1175 = vmatprep.subr.bf16.mxu0 0
    %1176 = vmatpush1.bf16.msra.mxu0 0
    %1177 = vmatprep.subr.bf16.mxu0 0
    %1178 = vmatpush1.bf16.msra.mxu0 0
    %1179 = vmatprep.subr.bf16.mxu0 0
    %1180 = vmatpush1.bf16.msra.mxu0 0
    %1181 = vmatprep.subr.bf16.mxu0 0
    %1182 = vmatpush1.bf16.msra.mxu0 0
    %1183 = vmatprep.subr.bf16.mxu0 0
    %1184 = vmatpush1.bf16.msra.mxu0 0
    %1185 = vmatprep.subr.bf16.mxu0 0
    %1186 = vmatpush1.bf16.msra.mxu0 0
    %1187 = vmatprep.subr.bf16.mxu0 0
    %1188 = vmatpush1.bf16.msra.mxu0 0
    %1189 = vmatprep.subr.bf16.mxu0 0
    %1190 = vmatpush1.bf16.msra.mxu0 0
    %1191 = vmatprep.mubr.bf16.mxu0 0
    %1192 = vmatmul.mubr.bf16.gmra.mrb[0].mxu0 %v1157
    %v1193 = vpop.f32.mrb[0].mxu0
    %v1194 = vadd.f32 0.0, %v1193
    %v1195 = vpop.f32.mrb[0].mxu0
    %v1196 = vadd.f32 0.0, %v1195
    %v1197 = vpop.f32.mrb[0].mxu0
    %v1198 = vpop.f32.mrb[0].mxu0
    %1199 = vdwg.mxu0
    %1200 = vmatprep.subr.bf16.mxu0 %v1127
    %1201 = vmatpush1.bf16.msra.mxu0 %v1126
    %1202 = vmatprep.subr.bf16.mxu0 %v1135
    %1203 = vmatpush1.bf16.msra.mxu0 %v1134
    %1204 = vmatprep.subr.bf16.mxu0 0
    %1205 = vmatpush1.bf16.msra.mxu0 0
    %1206 = vmatprep.subr.bf16.mxu0 0
    %1207 = vmatpush1.bf16.msra.mxu0 0
    %1208 = vmatprep.subr.bf16.mxu0 0
    %1209 = vmatpush1.bf16.msra.mxu0 0
    %1210 = vmatprep.subr.bf16.mxu0 0
    %1211 = vmatpush1.bf16.msra.mxu0 0
    %1212 = vmatprep.subr.bf16.mxu0 0
    %1213 = vmatpush1.bf16.msra.mxu0 0
    %1214 = vmatprep.subr.bf16.mxu0 0
    %1215 = vmatpush1.bf16.msra.mxu0 0
    %1216 = vmatprep.subr.bf16.mxu0 0
    %1217 = vmatpush1.bf16.msra.mxu0 0
    %1218 = vmatprep.subr.bf16.mxu0 0
    %1219 = vmatpush1.bf16.msra.mxu0 0
    %1220 = vmatprep.subr.bf16.mxu0 0
    %1221 = vmatpush1.bf16.msra.mxu0 0
    %1222 = vmatprep.subr.bf16.mxu0 0
    %1223 = vmatpush1.bf16.msra.mxu0 0
    %1224 = vmatprep.subr.bf16.mxu0 0
    %1225 = vmatpush1.bf16.msra.mxu0 0
    %1226 = vmatprep.subr.bf16.mxu0 0
    %1227 = vmatpush1.bf16.msra.mxu0 0
    %1228 = vmatprep.subr.bf16.mxu0 0
    %1229 = vmatpush1.bf16.msra.mxu0 0
    %1230 = vmatprep.subr.bf16.mxu0 0
    %1231 = vmatpush1.bf16.msra.mxu0 0
    %1232 = vmatprep.mubr.bf16.mxu0 0
    %1233 = vmatmul.mubr.bf16.gmra.mrb[0].mxu0 %v1157
    %v1234 = vpop.f32.mrb[0].mxu0
    %v1235 = vadd.f32 0.0, %v1234
    %v1236 = vpop.f32.mrb[0].mxu0
    %v1237 = vadd.f32 0.0, %v1236
    %v1238 = vpop.f32.mrb[0].mxu0
    %v1239 = vpop.f32.mrb[0].mxu0
    %1240 = vdwg.mxu0
    %1241 = vmatprep.subr.bf16.mxu0 %v1129
    %1242 = vmatpush1.bf16.msra.mxu0 %v1128
    %1243 = vmatprep.subr.bf16.mxu0 %v1137
    %1244 = vmatpush1.bf16.msra.mxu0 %v1136
    %1245 = vmatprep.subr.bf16.mxu0 0
    %1246 = vmatpush1.bf16.msra.mxu0 0
    %1247 = vmatprep.subr.bf16.mxu0 0
    %1248 = vmatpush1.bf16.msra.mxu0 0
    %1249 = vmatprep.subr.bf16.mxu0 0
    %1250 = vmatpush1.bf16.msra.mxu0 0
    %1251 = vmatprep.subr.bf16.mxu0 0
    %1252 = vmatpush1.bf16.msra.mxu0 0
    %1253 = vmatprep.subr.bf16.mxu0 0
    %1254 = vmatpush1.bf16.msra.mxu0 0
    %1255 = vmatprep.subr.bf16.mxu0 0
    %1256 = vmatpush1.bf16.msra.mxu0 0
    %1257 = vmatprep.subr.bf16.mxu0 0
    %1258 = vmatpush1.bf16.msra.mxu0 0
    %1259 = vmatprep.subr.bf16.mxu0 0
    %1260 = vmatpush1.bf16.msra.mxu0 0
    %1261 = vmatprep.subr.bf16.mxu0 0
    %1262 = vmatpush1.bf16.msra.mxu0 0
    %1263 = vmatprep.subr.bf16.mxu0 0
    %1264 = vmatpush1.bf16.msra.mxu0 0
    %1265 = vmatprep.subr.bf16.mxu0 0
    %1266 = vmatpush1.bf16.msra.mxu0 0
    %1267 = vmatprep.subr.bf16.mxu0 0
    %1268 = vmatpush1.bf16.msra.mxu0 0
    %1269 = vmatprep.subr.bf16.mxu0 0
    %1270 = vmatpush1.bf16.msra.mxu0 0
    %1271 = vmatprep.subr.bf16.mxu0 0
    %1272 = vmatpush1.bf16.msra.mxu0 0
    %1273 = vmatprep.mubr.bf16.mxu0 0
    %1274 = vmatmul.mubr.bf16.gmra.mrb[0].mxu0 %v1157
    %v1275 = vpop.f32.mrb[0].mxu0
    %v1276 = vadd.f32 0.0, %v1275
    %v1277 = vpop.f32.mrb[0].mxu0
    %v1278 = vadd.f32 0.0, %v1277
    %v1279 = vpop.f32.mrb[0].mxu0
    %v1280 = vpop.f32.mrb[0].mxu0
    %1281 = vdwg.mxu0
    %1282 = vmatprep.subr.bf16.mxu0 %v1131
    %1283 = vmatpush1.bf16.msra.mxu0 %v1130
    %1284 = vmatprep.subr.bf16.mxu0 %v1139
    %1285 = vmatpush1.bf16.msra.mxu0 %v1138
    %1286 = vmatprep.subr.bf16.mxu0 0
    %1287 = vmatpush1.bf16.msra.mxu0 0
    %1288 = vmatprep.subr.bf16.mxu0 0
    %1289 = vmatpush1.bf16.msra.mxu0 0
    %1290 = vmatprep.subr.bf16.mxu0 0
    %1291 = vmatpush1.bf16.msra.mxu0 0
    %1292 = vmatprep.subr.bf16.mxu0 0
    %1293 = vmatpush1.bf16.msra.mxu0 0
    %1294 = vmatprep.subr.bf16.mxu0 0
    %1295 = vmatpush1.bf16.msra.mxu0 0
    %1296 = vmatprep.subr.bf16.mxu0 0
    %1297 = vmatpush1.bf16.msra.mxu0 0
    %1298 = vmatprep.subr.bf16.mxu0 0
    %1299 = vmatpush1.bf16.msra.mxu0 0
    %1300 = vmatprep.subr.bf16.mxu0 0
    %1301 = vmatpush1.bf16.msra.mxu0 0
    %1302 = vmatprep.subr.bf16.mxu0 0
    %1303 = vmatpush1.bf16.msra.mxu0 0
    %1304 = vmatprep.subr.bf16.mxu0 0
    %1305 = vmatpush1.bf16.msra.mxu0 0
    %1306 = vmatprep.subr.bf16.mxu0 0
    %1307 = vmatpush1.bf16.msra.mxu0 0
    %1308 = vmatprep.subr.bf16.mxu0 0
    %1309 = vmatpush1.bf16.msra.mxu0 0
    %1310 = vmatprep.subr.bf16.mxu0 0
    %1311 = vmatpush1.bf16.msra.mxu0 0
    %1312 = vmatprep.subr.bf16.mxu0 0
    %1313 = vmatpush1.bf16.msra.mxu0 0
    %1314 = vmatprep.mubr.bf16.mxu0 0
    %1315 = vmatmul.mubr.bf16.gmra.mrb[0].mxu0 %v1157
    %v1316 = vpop.f32.mrb[0].mxu0
    %v1317 = vadd.f32 0.0, %v1316
    %v1318 = vpop.f32.mrb[0].mxu0
    %v1319 = vadd.f32 0.0, %v1318
    %v1320 = vpop.f32.mrb[0].mxu0
    %v1321 = vpop.f32.mrb[0].mxu0
    %1322 = vdwg.mxu0
    %v1339 = vunpack.c.l.b16 %v1043
    %v1340 = vunpack.c.h.b16 %v1043
    %v1341 = vunpack.c.l.b16 %v1044
    %v1342 = vunpack.c.h.b16 %v1044
    %v1343 = vunpack.c.l.b16 %v1045
    %v1344 = vunpack.c.h.b16 %v1045
    %v1345 = vunpack.c.l.b16 %v1046
    %v1346 = vunpack.c.h.b16 %v1046
    %v1347 = vunpack.c.l.b16 %v1047
    %v1348 = vunpack.c.h.b16 %v1047
    %v1349 = vunpack.c.l.b16 %v1048
    %v1350 = vunpack.c.h.b16 %v1048
    %v1351 = vunpack.c.l.b16 %v1049
    %v1352 = vunpack.c.h.b16 %v1049
    %v1353 = vunpack.c.l.b16 %v1050
    %v1354 = vunpack.c.h.b16 %v1050
    %v1355 = vunpack.c.l.b16 %v1051
    %v1356 = vunpack.c.h.b16 %v1051
    %v1357 = vunpack.c.l.b16 %v1052
    %v1358 = vunpack.c.h.b16 %v1052
    %v1359 = vunpack.c.l.b16 %v1053
    %v1360 = vunpack.c.h.b16 %v1053
    %v1361 = vunpack.c.l.b16 %v1054
    %v1362 = vunpack.c.h.b16 %v1054
    %v1363 = vunpack.c.l.b16 %v1055
    %v1364 = vunpack.c.h.b16 %v1055
    %v1365 = vunpack.c.l.b16 %v1056
    %v1366 = vunpack.c.h.b16 %v1056
    %v1367 = vunpack.c.l.b16 %v1057
    %v1368 = vunpack.c.h.b16 %v1057
    %v1369 = vunpack.c.l.b16 %v1058
    %v1370 = vunpack.c.h.b16 %v1058
    %v1371 = vpack.c.b16 %v1347, %v1339
    %v1372 = vpack.c.b16 %v1348, %v1340
    %v1373 = vpack.c.b16 %v1349, %v1341
    %v1374 = vpack.c.b16 %v1350, %v1342
    %v1375 = vpack.c.b16 %v1351, %v1343
    %v1376 = vpack.c.b16 %v1352, %v1344
    %v1377 = vpack.c.b16 %v1353, %v1345
    %v1378 = vpack.c.b16 %v1354, %v1346
    %v1379 = vpack.c.b16 %v1363, %v1355
    %v1380 = vpack.c.b16 %v1364, %v1356
    %v1381 = vpack.c.b16 %v1365, %v1357
    %v1382 = vpack.c.b16 %v1366, %v1358
    %v1383 = vpack.c.b16 %v1367, %v1359
    %v1384 = vpack.c.b16 %v1368, %v1360
    %v1385 = vpack.c.b16 %v1369, %v1361
    %v1386 = vpack.c.b16 %v1370, %v1362
    %v1404 = vsel %vm179, %v1042, 0
    %1406 = vmatprep.subr.bf16.mxu0 %v1372
    %1407 = vmatpush1.bf16.msra.mxu0 %v1371
    %1408 = vmatprep.subr.bf16.mxu0 %v1380
    %1409 = vmatpush1.bf16.msra.mxu0 %v1379
    %1410 = vmatprep.subr.bf16.mxu0 0
    %1411 = vmatpush1.bf16.msra.mxu0 0
    %1412 = vmatprep.subr.bf16.mxu0 0
    %1413 = vmatpush1.bf16.msra.mxu0 0
    %1414 = vmatprep.subr.bf16.mxu0 0
    %1415 = vmatpush1.bf16.msra.mxu0 0
    %1416 = vmatprep.subr.bf16.mxu0 0
    %1417 = vmatpush1.bf16.msra.mxu0 0
    %1418 = vmatprep.subr.bf16.mxu0 0
    %1419 = vmatpush1.bf16.msra.mxu0 0
    %1420 = vmatprep.subr.bf16.mxu0 0
    %1421 = vmatpush1.bf16.msra.mxu0 0
    %1422 = vmatprep.subr.bf16.mxu0 0
    %1423 = vmatpush1.bf16.msra.mxu0 0
    %1424 = vmatprep.subr.bf16.mxu0 0
    %1425 = vmatpush1.bf16.msra.mxu0 0
    %1426 = vmatprep.subr.bf16.mxu0 0
    %1427 = vmatpush1.bf16.msra.mxu0 0
    %1428 = vmatprep.subr.bf16.mxu0 0
    %1429 = vmatpush1.bf16.msra.mxu0 0
    %1430 = vmatprep.subr.bf16.mxu0 0
    %1431 = vmatpush1.bf16.msra.mxu0 0
    %1432 = vmatprep.subr.bf16.mxu0 0
    %1433 = vmatpush1.bf16.msra.mxu0 0
    %1434 = vmatprep.subr.bf16.mxu0 0
    %1435 = vmatpush1.bf16.msra.mxu0 0
    %1436 = vmatprep.subr.bf16.mxu0 0
    %1437 = vmatpush1.bf16.msra.mxu0 0
    %1438 = vmatprep.mubr.bf16.mxu0 0
    %1439 = vmatmul.mubr.bf16.gmra.mrb[0].mxu0 %v1404
    %v1440 = vpop.f32.mrb[0].mxu0
    %v1441 = vadd.f32 %v1194, %v1440
    %v1442 = vpop.f32.mrb[0].mxu0
    %v1443 = vadd.f32 %v1196, %v1442
    %v1444 = vpop.f32.mrb[0].mxu0
    %v1445 = vpop.f32.mrb[0].mxu0
    %1446 = vdwg.mxu0
    %1447 = vmatprep.subr.bf16.mxu0 %v1374
    %1448 = vmatpush1.bf16.msra.mxu0 %v1373
    %1449 = vmatprep.subr.bf16.mxu0 %v1382
    %1450 = vmatpush1.bf16.msra.mxu0 %v1381
    %1451 = vmatprep.subr.bf16.mxu0 0
    %1452 = vmatpush1.bf16.msra.mxu0 0
    %1453 = vmatprep.subr.bf16.mxu0 0
    %1454 = vmatpush1.bf16.msra.mxu0 0
    %1455 = vmatprep.subr.bf16.mxu0 0
    %1456 = vmatpush1.bf16.msra.mxu0 0
    %1457 = vmatprep.subr.bf16.mxu0 0
    %1458 = vmatpush1.bf16.msra.mxu0 0
    %1459 = vmatprep.subr.bf16.mxu0 0
    %1460 = vmatpush1.bf16.msra.mxu0 0
    %1461 = vmatprep.subr.bf16.mxu0 0
    %1462 = vmatpush1.bf16.msra.mxu0 0
    %1463 = vmatprep.subr.bf16.mxu0 0
    %1464 = vmatpush1.bf16.msra.mxu0 0
    %1465 = vmatprep.subr.bf16.mxu0 0
    %1466 = vmatpush1.bf16.msra.mxu0 0
    %1467 = vmatprep.subr.bf16.mxu0 0
    %1468 = vmatpush1.bf16.msra.mxu0 0
    %1469 = vmatprep.subr.bf16.mxu0 0
    %1470 = vmatpush1.bf16.msra.mxu0 0
    %1471 = vmatprep.subr.bf16.mxu0 0
    %1472 = vmatpush1.bf16.msra.mxu0 0
    %1473 = vmatprep.subr.bf16.mxu0 0
    %1474 = vmatpush1.bf16.msra.mxu0 0
    %1475 = vmatprep.subr.bf16.mxu0 0
    %1476 = vmatpush1.bf16.msra.mxu0 0
    %1477 = vmatprep.subr.bf16.mxu0 0
    %1478 = vmatpush1.bf16.msra.mxu0 0
    %1479 = vmatprep.mubr.bf16.mxu0 0
    %1480 = vmatmul.mubr.bf16.gmra.mrb[0].mxu0 %v1404
    %v1481 = vpop.f32.mrb[0].mxu0
    %v1482 = vadd.f32 %v1235, %v1481
    %v1483 = vpop.f32.mrb[0].mxu0
    %v1484 = vadd.f32 %v1237, %v1483
    %v1485 = vpop.f32.mrb[0].mxu0
    %v1486 = vpop.f32.mrb[0].mxu0
    %1487 = vdwg.mxu0
    %1488 = vmatprep.subr.bf16.mxu0 %v1376
    %1489 = vmatpush1.bf16.msra.mxu0 %v1375
    %1490 = vmatprep.subr.bf16.mxu0 %v1384
    %1491 = vmatpush1.bf16.msra.mxu0 %v1383
    %1492 = vmatprep.subr.bf16.mxu0 0
    %1493 = vmatpush1.bf16.msra.mxu0 0
    %1494 = vmatprep.subr.bf16.mxu0 0
    %1495 = vmatpush1.bf16.msra.mxu0 0
    %1496 = vmatprep.subr.bf16.mxu0 0
    %1497 = vmatpush1.bf16.msra.mxu0 0
    %1498 = vmatprep.subr.bf16.mxu0 0
    %1499 = vmatpush1.bf16.msra.mxu0 0
    %1500 = vmatprep.subr.bf16.mxu0 0
    %1501 = vmatpush1.bf16.msra.mxu0 0
    %1502 = vmatprep.subr.bf16.mxu0 0
    %1503 = vmatpush1.bf16.msra.mxu0 0
    %1504 = vmatprep.subr.bf16.mxu0 0
    %1505 = vmatpush1.bf16.msra.mxu0 0
    %1506 = vmatprep.subr.bf16.mxu0 0
    %1507 = vmatpush1.bf16.msra.mxu0 0
    %1508 = vmatprep.subr.bf16.mxu0 0
    %1509 = vmatpush1.bf16.msra.mxu0 0
    %1510 = vmatprep.subr.bf16.mxu0 0
    %1511 = vmatpush1.bf16.msra.mxu0 0
    %1512 = vmatprep.subr.bf16.mxu0 0
    %1513 = vmatpush1.bf16.msra.mxu0 0
    %1514 = vmatprep.subr.bf16.mxu0 0
    %1515 = vmatpush1.bf16.msra.mxu0 0
    %1516 = vmatprep.subr.bf16.mxu0 0
    %1517 = vmatpush1.bf16.msra.mxu0 0
    %1518 = vmatprep.subr.bf16.mxu0 0
    %1519 = vmatpush1.bf16.msra.mxu0 0
    %1520 = vmatprep.mubr.bf16.mxu0 0
    %1521 = vmatmul.mubr.bf16.gmra.mrb[0].mxu0 %v1404
    %v1522 = vpop.f32.mrb[0].mxu0
    %v1523 = vadd.f32 %v1276, %v1522
    %v1524 = vpop.f32.mrb[0].mxu0
    %v1525 = vadd.f32 %v1278, %v1524
    %v1526 = vpop.f32.mrb[0].mxu0
    %v1527 = vpop.f32.mrb[0].mxu0
    %1528 = vdwg.mxu0
    %1529 = vmatprep.subr.bf16.mxu0 %v1378
    %1530 = vmatpush1.bf16.msra.mxu0 %v1377
    %1531 = vmatprep.subr.bf16.mxu0 %v1386
    %1532 = vmatpush1.bf16.msra.mxu0 %v1385
    %1533 = vmatprep.subr.bf16.mxu0 0
    %1534 = vmatpush1.bf16.msra.mxu0 0
    %1535 = vmatprep.subr.bf16.mxu0 0
    %1536 = vmatpush1.bf16.msra.mxu0 0
    %1537 = vmatprep.subr.bf16.mxu0 0
    %1538 = vmatpush1.bf16.msra.mxu0 0
    %1539 = vmatprep.subr.bf16.mxu0 0
    %1540 = vmatpush1.bf16.msra.mxu0 0
    %1541 = vmatprep.subr.bf16.mxu0 0
    %1542 = vmatpush1.bf16.msra.mxu0 0
    %1543 = vmatprep.subr.bf16.mxu0 0
    %1544 = vmatpush1.bf16.msra.mxu0 0
    %1545 = vmatprep.subr.bf16.mxu0 0
    %1546 = vmatpush1.bf16.msra.mxu0 0
    %1547 = vmatprep.subr.bf16.mxu0 0
    %1548 = vmatpush1.bf16.msra.mxu0 0
    %1549 = vmatprep.subr.bf16.mxu0 0
    %1550 = vmatpush1.bf16.msra.mxu0 0
    %1551 = vmatprep.subr.bf16.mxu0 0
    %1552 = vmatpush1.bf16.msra.mxu0 0
    %1553 = vmatprep.subr.bf16.mxu0 0
    %1554 = vmatpush1.bf16.msra.mxu0 0
    %1555 = vmatprep.subr.bf16.mxu0 0
    %1556 = vmatpush1.bf16.msra.mxu0 0
    %1557 = vmatprep.subr.bf16.mxu0 0
    %1558 = vmatpush1.bf16.msra.mxu0 0
    %1559 = vmatprep.subr.bf16.mxu0 0
    %1560 = vmatpush1.bf16.msra.mxu0 0
    %1561 = vmatprep.mubr.bf16.mxu0 0
    %1562 = vmatmul.mubr.bf16.gmra.mrb[0].mxu0 %v1404
    %v1563 = vpop.f32.mrb[0].mxu0
    %v1564 = vadd.f32 %v1317, %v1563
    %v1565 = vpop.f32.mrb[0].mxu0
    %v1566 = vadd.f32 %v1319, %v1565
    %v1567 = vpop.f32.mrb[0].mxu0
    %v1568 = vpop.f32.mrb[0].mxu0
    %1569 = vdwg.mxu0
    %v1570 = vld [vmem:[%s8] sm:$0xff]
    %v1572 = vlaneseq
    %v1573 = vshrl.u32 %v1572, 7
    %v1574 = vsub.s32 0, %v1573
    %v1575 = vrot.slane %v1570, %v1574
    %v1576 = vlaneseq
    %v1577 = vshrl.u32 %v1576, 7
    %v1578 = vsub.s32 1, %v1577
    %v1579 = vrot.slane %v1570, %v1578
    %v1580 = vlaneseq
    %v1581 = vshrl.u32 %v1580, 7
    %v1582 = vsub.s32 2, %v1581
    %v1583 = vrot.slane %v1570, %v1582
    %v1584 = vlaneseq
    %v1585 = vshrl.u32 %v1584, 7
    %v1586 = vsub.s32 3, %v1585
    %v1587 = vrot.slane %v1570, %v1586
    %v1588 = vlaneseq
    %v1589 = vshrl.u32 %v1588, 7
    %v1590 = vsub.s32 4, %v1589
    %v1591 = vrot.slane %v1570, %v1590
    %v1592 = vlaneseq
    %v1593 = vshrl.u32 %v1592, 7
    %v1594 = vsub.s32 5, %v1593
    %v1595 = vrot.slane %v1570, %v1594
    %v1596 = vlaneseq
    %v1597 = vshrl.u32 %v1596, 7
    %v1598 = vsub.s32 6, %v1597
    %v1599 = vrot.slane %v1570, %v1598
    %v1600 = vlaneseq
    %v1601 = vshrl.u32 %v1600, 7
    %v1602 = vsub.s32 7, %v1601
    %v1603 = vrot.slane %v1570, %v1602
    %v1612 = vadd.f32 %v1441, %v1575
    %v1613 = vadd.f32 %v1443, %v1579
    %v1614 = vadd.f32 %v1482, %v1583
    %v1615 = vadd.f32 %v1484, %v1587
    %v1616 = vadd.f32 %v1523, %v1591
    %v1617 = vadd.f32 %v1525, %v1595
    %v1618 = vadd.f32 %v1564, %v1599
    %v1619 = vadd.f32 %v1566, %v1603
    %v1620 = vmax.f32 %v1612, 0.0
    %v1621 = vmax.f32 %v1613, 0.0
    %v1622 = vmax.f32 %v1614, 0.0
    %v1623 = vmax.f32 %v1615, 0.0
    %v1624 = vmax.f32 %v1616, 0.0
    %v1625 = vmax.f32 %v1617, 0.0
    %v1626 = vmax.f32 %v1618, 0.0
    %v1627 = vmax.f32 %v1619, 0.0
    %v1628 = vpack.c.bf16 %v1620, %v1620
    %v1629 = vpack.c.bf16 %v1621, %v1621
    %v1630 = vpack.c.bf16 %v1622, %v1622
    %v1631 = vpack.c.bf16 %v1623, %v1623
    %v1632 = vpack.c.bf16 %v1624, %v1624
    %v1633 = vpack.c.bf16 %v1625, %v1625
    %v1634 = vpack.c.bf16 %v1626, %v1626
    %v1635 = vpack.c.bf16 %v1627, %v1627
    %v1636 = vld [vmem:[%s9] sm:$0xf]
    %v1637 = vld [vmem:[%s9 + $0x4] sm:$0xf]
    %v1638 = vld [vmem:[%s9 + $0x8] sm:$0xf]
    %v1639 = vld [vmem:[%s9 + $0xc] sm:$0xf]
    %v1640 = vld [vmem:[%s9 + $0x10] sm:$0xf]
    %v1641 = vld [vmem:[%s9 + $0x14] sm:$0xf]
    %v1642 = vld [vmem:[%s9 + $0x18] sm:$0xf]
    %v1643 = vld [vmem:[%s9 + $0x1c] sm:$0xf]
    %v1644 = vld [vmem:[%s9 + $0x20] sm:$0xf]
    %v1645 = vld [vmem:[%s9 + $0x24] sm:$0xf]
    %v1646 = vld [vmem:[%s9 + $0x28] sm:$0xf]
    %v1647 = vld [vmem:[%s9 + $0x2c] sm:$0xf]
    %v1648 = vld [vmem:[%s9 + $0x30] sm:$0xf]
    %v1649 = vld [vmem:[%s9 + $0x34] sm:$0xf]
    %v1650 = vld [vmem:[%s9 + $0x38] sm:$0xf]
    %v1651 = vld [vmem:[%s9 + $0x3c] sm:$0xf]
    %v1652 = vld [vmem:[%s9 + $0x40] sm:$0xf]
    %v1653 = vld [vmem:[%s9 + $0x44] sm:$0xf]
    %v1654 = vld [vmem:[%s9 + $0x48] sm:$0xf]
    %v1655 = vld [vmem:[%s9 + $0x4c] sm:$0xf]
    %v1656 = vld [vmem:[%s9 + $0x50] sm:$0xf]
    %v1657 = vld [vmem:[%s9 + $0x54] sm:$0xf]
    %v1658 = vld [vmem:[%s9 + $0x58] sm:$0xf]
    %v1659 = vld [vmem:[%s9 + $0x5c] sm:$0xf]
    %v1660 = vld [vmem:[%s9 + $0x60] sm:$0xf]
    %v1661 = vld [vmem:[%s9 + $0x64] sm:$0xf]
    %v1662 = vld [vmem:[%s9 + $0x68] sm:$0xf]
    %v1663 = vld [vmem:[%s9 + $0x6c] sm:$0xf]
    %v1664 = vld [vmem:[%s9 + $0x70] sm:$0xf]
    %v1665 = vld [vmem:[%s9 + $0x74] sm:$0xf]
    %v1666 = vld [vmem:[%s9 + $0x78] sm:$0xf]
    %v1667 = vld [vmem:[%s9 + $0x7c] sm:$0xf]
    %v1668 = vld [vmem:[%s9 + $0x80] sm:$0xf]
    %v1669 = vld [vmem:[%s9 + $0x84] sm:$0xf]
    %v1670 = vld [vmem:[%s9 + $0x88] sm:$0xf]
    %v1671 = vld [vmem:[%s9 + $0x8c] sm:$0xf]
    %v1672 = vld [vmem:[%s9 + $0x90] sm:$0xf]
    %v1673 = vld [vmem:[%s9 + $0x94] sm:$0xf]
    %v1674 = vld [vmem:[%s9 + $0x98] sm:$0xf]
    %v1675 = vld [vmem:[%s9 + $0x9c] sm:$0xf]
    %v1676 = vld [vmem:[%s9 + $0xa0] sm:$0xf]
    %v1677 = vld [vmem:[%s9 + $0xa4] sm:$0xf]
    %v1678 = vld [vmem:[%s9 + $0xa8] sm:$0xf]
    %v1679 = vld [vmem:[%s9 + $0xac] sm:$0xf]
    %v1680 = vld [vmem:[%s9 + $0xb0] sm:$0xf]
    %v1681 = vld [vmem:[%s9 + $0xb4] sm:$0xf]
    %v1682 = vld [vmem:[%s9 + $0xb8] sm:$0xf]
    %v1683 = vld [vmem:[%s9 + $0xbc] sm:$0xf]
    %v1684 = vld [vmem:[%s9 + $0xc0] sm:$0xf]
    %v1685 = vld [vmem:[%s9 + $0xc4] sm:$0xf]
    %v1686 = vld [vmem:[%s9 + $0xc8] sm:$0xf]
    %v1687 = vld [vmem:[%s9 + $0xcc] sm:$0xf]
    %v1688 = vld [vmem:[%s9 + $0xd0] sm:$0xf]
    %v1689 = vld [vmem:[%s9 + $0xd4] sm:$0xf]
    %v1690 = vld [vmem:[%s9 + $0xd8] sm:$0xf]
    %v1691 = vld [vmem:[%s9 + $0xdc] sm:$0xf]
    %v1692 = vld [vmem:[%s9 + $0xe0] sm:$0xf]
    %v1693 = vld [vmem:[%s9 + $0xe4] sm:$0xf]
    %v1694 = vld [vmem:[%s9 + $0xe8] sm:$0xf]
    %v1695 = vld [vmem:[%s9 + $0xec] sm:$0xf]
    %v1696 = vld [vmem:[%s9 + $0xf0] sm:$0xf]
    %v1697 = vld [vmem:[%s9 + $0xf4] sm:$0xf]
    %v1698 = vld [vmem:[%s9 + $0xf8] sm:$0xf]
    %v1699 = vld [vmem:[%s9 + $0xfc] sm:$0xf]
    %v1700 = vld [vmem:[%s9 + $0x100] sm:$0xf]
    %v1701 = vld [vmem:[%s9 + $0x104] sm:$0xf]
    %v1702 = vld [vmem:[%s9 + $0x108] sm:$0xf]
    %v1703 = vld [vmem:[%s9 + $0x10c] sm:$0xf]
    %v1704 = vld [vmem:[%s9 + $0x110] sm:$0xf]
    %v1705 = vld [vmem:[%s9 + $0x114] sm:$0xf]
    %v1706 = vld [vmem:[%s9 + $0x118] sm:$0xf]
    %v1707 = vld [vmem:[%s9 + $0x11c] sm:$0xf]
    %v1708 = vld [vmem:[%s9 + $0x120] sm:$0xf]
    %v1709 = vld [vmem:[%s9 + $0x124] sm:$0xf]
    %v1710 = vld [vmem:[%s9 + $0x128] sm:$0xf]
    %v1711 = vld [vmem:[%s9 + $0x12c] sm:$0xf]
    %v1712 = vld [vmem:[%s9 + $0x130] sm:$0xf]
    %v1713 = vld [vmem:[%s9 + $0x134] sm:$0xf]
    %v1714 = vld [vmem:[%s9 + $0x138] sm:$0xf]
    %v1715 = vld [vmem:[%s9 + $0x13c] sm:$0xf]
    %v1716 = vld [vmem:[%s9 + $0x140] sm:$0xf]
    %v1717 = vld [vmem:[%s9 + $0x144] sm:$0xf]
    %v1718 = vld [vmem:[%s9 + $0x148] sm:$0xf]
    %v1719 = vld [vmem:[%s9 + $0x14c] sm:$0xf]
    %v1720 = vld [vmem:[%s9 + $0x150] sm:$0xf]
    %v1721 = vld [vmem:[%s9 + $0x154] sm:$0xf]
    %v1722 = vld [vmem:[%s9 + $0x158] sm:$0xf]
    %v1723 = vld [vmem:[%s9 + $0x15c] sm:$0xf]
    %v1724 = vld [vmem:[%s9 + $0x160] sm:$0xf]
    %v1725 = vld [vmem:[%s9 + $0x164] sm:$0xf]
    %v1726 = vld [vmem:[%s9 + $0x168] sm:$0xf]
    %v1727 = vld [vmem:[%s9 + $0x16c] sm:$0xf]
    %v1728 = vld [vmem:[%s9 + $0x170] sm:$0xf]
    %v1729 = vld [vmem:[%s9 + $0x174] sm:$0xf]
    %v1730 = vld [vmem:[%s9 + $0x178] sm:$0xf]
    %v1731 = vld [vmem:[%s9 + $0x17c] sm:$0xf]
    %v1732 = vld [vmem:[%s9 + $0x180] sm:$0xf]
    %v1733 = vld [vmem:[%s9 + $0x184] sm:$0xf]
    %v1734 = vld [vmem:[%s9 + $0x188] sm:$0xf]
    %v1735 = vld [vmem:[%s9 + $0x18c] sm:$0xf]
    %v1736 = vld [vmem:[%s9 + $0x190] sm:$0xf]
    %v1737 = vld [vmem:[%s9 + $0x194] sm:$0xf]
    %v1738 = vld [vmem:[%s9 + $0x198] sm:$0xf]
    %v1739 = vld [vmem:[%s9 + $0x19c] sm:$0xf]
    %v1740 = vld [vmem:[%s9 + $0x1a0] sm:$0xf]
    %v1741 = vld [vmem:[%s9 + $0x1a4] sm:$0xf]
    %v1742 = vld [vmem:[%s9 + $0x1a8] sm:$0xf]
    %v1743 = vld [vmem:[%s9 + $0x1ac] sm:$0xf]
    %v1744 = vld [vmem:[%s9 + $0x1b0] sm:$0xf]
    %v1745 = vld [vmem:[%s9 + $0x1b4] sm:$0xf]
    %v1746 = vld [vmem:[%s9 + $0x1b8] sm:$0xf]
    %v1747 = vld [vmem:[%s9 + $0x1bc] sm:$0xf]
    %v1748 = vld [vmem:[%s9 + $0x1c0] sm:$0xf]
    %v1749 = vld [vmem:[%s9 + $0x1c4] sm:$0xf]
    %v1750 = vld [vmem:[%s9 + $0x1c8] sm:$0xf]
    %v1751 = vld [vmem:[%s9 + $0x1cc] sm:$0xf]
    %v1752 = vld [vmem:[%s9 + $0x1d0] sm:$0xf]
    %v1753 = vld [vmem:[%s9 + $0x1d4] sm:$0xf]
    %v1754 = vld [vmem:[%s9 + $0x1d8] sm:$0xf]
    %v1755 = vld [vmem:[%s9 + $0x1dc] sm:$0xf]
    %v1756 = vld [vmem:[%s9 + $0x1e0] sm:$0xf]
    %v1757 = vld [vmem:[%s9 + $0x1e4] sm:$0xf]
    %v1758 = vld [vmem:[%s9 + $0x1e8] sm:$0xf]
    %v1759 = vld [vmem:[%s9 + $0x1ec] sm:$0xf]
    %v1760 = vld [vmem:[%s9 + $0x1f0] sm:$0xf]
    %v1761 = vld [vmem:[%s9 + $0x1f4] sm:$0xf]
    %v1762 = vld [vmem:[%s9 + $0x1f8] sm:$0xf]
    %v1763 = vld [vmem:[%s9 + $0x1fc] sm:$0xf]
    %v1764 = vld [vmem:[%s10] sm:$0x1]
    %v1766 = vlaneseq
    %v1767 = vshrl.u32 %v1766, 7
    %v1768 = vsub.s32 0, %v1767
    %v1769 = vrot.slane %v1764, %v1768
    %v1899 = vunpack.c.l.b16 %v1636
    %v1900 = vunpack.c.l.b16 %v1637
    %v1901 = vunpack.c.l.b16 %v1638
    %v1902 = vunpack.c.l.b16 %v1639
    %v1903 = vunpack.c.l.b16 %v1640
    %v1904 = vunpack.c.l.b16 %v1641
    %v1905 = vunpack.c.l.b16 %v1642
    %v1906 = vunpack.c.l.b16 %v1643
    %v1907 = vunpack.c.l.b16 %v1644
    %v1908 = vunpack.c.l.b16 %v1645
    %v1909 = vunpack.c.l.b16 %v1646
    %v1910 = vunpack.c.l.b16 %v1647
    %v1911 = vunpack.c.l.b16 %v1648
    %v1912 = vunpack.c.l.b16 %v1649
    %v1913 = vunpack.c.l.b16 %v1650
    %v1914 = vunpack.c.l.b16 %v1651
    %v1915 = vunpack.c.l.b16 %v1652
    %v1916 = vunpack.c.l.b16 %v1653
    %v1917 = vunpack.c.l.b16 %v1654
    %v1918 = vunpack.c.l.b16 %v1655
    %v1919 = vunpack.c.l.b16 %v1656
    %v1920 = vunpack.c.l.b16 %v1657
    %v1921 = vunpack.c.l.b16 %v1658
    %v1922 = vunpack.c.l.b16 %v1659
    %v1923 = vunpack.c.l.b16 %v1660
    %v1924 = vunpack.c.l.b16 %v1661
    %v1925 = vunpack.c.l.b16 %v1662
    %v1926 = vunpack.c.l.b16 %v1663
    %v1927 = vunpack.c.l.b16 %v1664
    %v1928 = vunpack.c.l.b16 %v1665
    %v1929 = vunpack.c.l.b16 %v1666
    %v1930 = vunpack.c.l.b16 %v1667
    %v1931 = vunpack.c.l.b16 %v1668
    %v1932 = vunpack.c.l.b16 %v1669
    %v1933 = vunpack.c.l.b16 %v1670
    %v1934 = vunpack.c.l.b16 %v1671
    %v1935 = vunpack.c.l.b16 %v1672
    %v1936 = vunpack.c.l.b16 %v1673
    %v1937 = vunpack.c.l.b16 %v1674
    %v1938 = vunpack.c.l.b16 %v1675
    %v1939 = vunpack.c.l.b16 %v1676
    %v1940 = vunpack.c.l.b16 %v1677
    %v1941 = vunpack.c.l.b16 %v1678
    %v1942 = vunpack.c.l.b16 %v1679
    %v1943 = vunpack.c.l.b16 %v1680
    %v1944 = vunpack.c.l.b16 %v1681
    %v1945 = vunpack.c.l.b16 %v1682
    %v1946 = vunpack.c.l.b16 %v1683
    %v1947 = vunpack.c.l.b16 %v1684
    %v1948 = vunpack.c.l.b16 %v1685
    %v1949 = vunpack.c.l.b16 %v1686
    %v1950 = vunpack.c.l.b16 %v1687
    %v1951 = vunpack.c.l.b16 %v1688
    %v1952 = vunpack.c.l.b16 %v1689
    %v1953 = vunpack.c.l.b16 %v1690
    %v1954 = vunpack.c.l.b16 %v1691
    %v1955 = vunpack.c.l.b16 %v1692
    %v1956 = vunpack.c.l.b16 %v1693
    %v1957 = vunpack.c.l.b16 %v1694
    %v1958 = vunpack.c.l.b16 %v1695
    %v1959 = vunpack.c.l.b16 %v1696
    %v1960 = vunpack.c.l.b16 %v1697
    %v1961 = vunpack.c.l.b16 %v1698
    %v1962 = vunpack.c.l.b16 %v1699
    %v1963 = vunpack.c.l.b16 %v1700
    %v1964 = vunpack.c.l.b16 %v1701
    %v1965 = vunpack.c.l.b16 %v1702
    %v1966 = vunpack.c.l.b16 %v1703
    %v1967 = vunpack.c.l.b16 %v1704
    %v1968 = vunpack.c.l.b16 %v1705
    %v1969 = vunpack.c.l.b16 %v1706
    %v1970 = vunpack.c.l.b16 %v1707
    %v1971 = vunpack.c.l.b16 %v1708
    %v1972 = vunpack.c.l.b16 %v1709
    %v1973 = vunpack.c.l.b16 %v1710
    %v1974 = vunpack.c.l.b16 %v1711
    %v1975 = vunpack.c.l.b16 %v1712
    %v1976 = vunpack.c.l.b16 %v1713
    %v1977 = vunpack.c.l.b16 %v1714
    %v1978 = vunpack.c.l.b16 %v1715
    %v1979 = vunpack.c.l.b16 %v1716
    %v1980 = vunpack.c.l.b16 %v1717
    %v1981 = vunpack.c.l.b16 %v1718
    %v1982 = vunpack.c.l.b16 %v1719
    %v1983 = vunpack.c.l.b16 %v1720
    %v1984 = vunpack.c.l.b16 %v1721
    %v1985 = vunpack.c.l.b16 %v1722
    %v1986 = vunpack.c.l.b16 %v1723
    %v1987 = vunpack.c.l.b16 %v1724
    %v1988 = vunpack.c.l.b16 %v1725
    %v1989 = vunpack.c.l.b16 %v1726
    %v1990 = vunpack.c.l.b16 %v1727
    %v1991 = vunpack.c.l.b16 %v1728
    %v1992 = vunpack.c.l.b16 %v1729
    %v1993 = vunpack.c.l.b16 %v1730
    %v1994 = vunpack.c.l.b16 %v1731
    %v1995 = vunpack.c.l.b16 %v1732
    %v1996 = vunpack.c.l.b16 %v1733
    %v1997 = vunpack.c.l.b16 %v1734
    %v1998 = vunpack.c.l.b16 %v1735
    %v1999 = vunpack.c.l.b16 %v1736
    %v2000 = vunpack.c.l.b16 %v1737
    %v2001 = vunpack.c.l.b16 %v1738
    %v2002 = vunpack.c.l.b16 %v1739
    %v2003 = vunpack.c.l.b16 %v1740
    %v2004 = vunpack.c.l.b16 %v1741
    %v2005 = vunpack.c.l.b16 %v1742
    %v2006 = vunpack.c.l.b16 %v1743
    %v2007 = vunpack.c.l.b16 %v1744
    %v2008 = vunpack.c.l.b16 %v1745
    %v2009 = vunpack.c.l.b16 %v1746
    %v2010 = vunpack.c.l.b16 %v1747
    %v2011 = vunpack.c.l.b16 %v1748
    %v2012 = vunpack.c.l.b16 %v1749
    %v2013 = vunpack.c.l.b16 %v1750
    %v2014 = vunpack.c.l.b16 %v1751
    %v2015 = vunpack.c.l.b16 %v1752
    %v2016 = vunpack.c.l.b16 %v1753
    %v2017 = vunpack.c.l.b16 %v1754
    %v2018 = vunpack.c.l.b16 %v1755
    %v2019 = vunpack.c.l.b16 %v1756
    %v2020 = vunpack.c.l.b16 %v1757
    %v2021 = vunpack.c.l.b16 %v1758
    %v2022 = vunpack.c.l.b16 %v1759
    %v2023 = vunpack.c.l.b16 %v1760
    %v2024 = vunpack.c.l.b16 %v1761
    %v2025 = vunpack.c.l.b16 %v1762
    %v2026 = vunpack.c.l.b16 %v1763
    %v2027 = vpack.c.b16 %v1900, %v1899
    %v2028 = vpack.c.b16 %v1902, %v1901
    %v2029 = vpack.c.b16 %v1904, %v1903
    %v2030 = vpack.c.b16 %v1906, %v1905
    %v2031 = vpack.c.b16 %v1908, %v1907
    %v2032 = vpack.c.b16 %v1910, %v1909
    %v2033 = vpack.c.b16 %v1912, %v1911
    %v2034 = vpack.c.b16 %v1914, %v1913
    %v2035 = vpack.c.b16 %v1916, %v1915
    %v2036 = vpack.c.b16 %v1918, %v1917
    %v2037 = vpack.c.b16 %v1920, %v1919
    %v2038 = vpack.c.b16 %v1922, %v1921
    %v2039 = vpack.c.b16 %v1924, %v1923
    %v2040 = vpack.c.b16 %v1926, %v1925
    %v2041 = vpack.c.b16 %v1928, %v1927
    %v2042 = vpack.c.b16 %v1930, %v1929
    %v2043 = vpack.c.b16 %v1932, %v1931
    %v2044 = vpack.c.b16 %v1934, %v1933
    %v2045 = vpack.c.b16 %v1936, %v1935
    %v2046 = vpack.c.b16 %v1938, %v1937
    %v2047 = vpack.c.b16 %v1940, %v1939
    %v2048 = vpack.c.b16 %v1942, %v1941
    %v2049 = vpack.c.b16 %v1944, %v1943
    %v2050 = vpack.c.b16 %v1946, %v1945
    %v2051 = vpack.c.b16 %v1948, %v1947
    %v2052 = vpack.c.b16 %v1950, %v1949
    %v2053 = vpack.c.b16 %v1952, %v1951
    %v2054 = vpack.c.b16 %v1954, %v1953
    %v2055 = vpack.c.b16 %v1956, %v1955
    %v2056 = vpack.c.b16 %v1958, %v1957
    %v2057 = vpack.c.b16 %v1960, %v1959
    %v2058 = vpack.c.b16 %v1962, %v1961
    %v2059 = vpack.c.b16 %v1964, %v1963
    %v2060 = vpack.c.b16 %v1966, %v1965
    %v2061 = vpack.c.b16 %v1968, %v1967
    %v2062 = vpack.c.b16 %v1970, %v1969
    %v2063 = vpack.c.b16 %v1972, %v1971
    %v2064 = vpack.c.b16 %v1974, %v1973
    %v2065 = vpack.c.b16 %v1976, %v1975
    %v2066 = vpack.c.b16 %v1978, %v1977
    %v2067 = vpack.c.b16 %v1980, %v1979
    %v2068 = vpack.c.b16 %v1982, %v1981
    %v2069 = vpack.c.b16 %v1984, %v1983
    %v2070 = vpack.c.b16 %v1986, %v1985
    %v2071 = vpack.c.b16 %v1988, %v1987
    %v2072 = vpack.c.b16 %v1990, %v1989
    %v2073 = vpack.c.b16 %v1992, %v1991
    %v2074 = vpack.c.b16 %v1994, %v1993
    %v2075 = vpack.c.b16 %v1996, %v1995
    %v2076 = vpack.c.b16 %v1998, %v1997
    %v2077 = vpack.c.b16 %v2000, %v1999
    %v2078 = vpack.c.b16 %v2002, %v2001
    %v2079 = vpack.c.b16 %v2004, %v2003
    %v2080 = vpack.c.b16 %v2006, %v2005
    %v2081 = vpack.c.b16 %v2008, %v2007
    %v2082 = vpack.c.b16 %v2010, %v2009
    %v2083 = vpack.c.b16 %v2012, %v2011
    %v2084 = vpack.c.b16 %v2014, %v2013
    %v2085 = vpack.c.b16 %v2016, %v2015
    %v2086 = vpack.c.b16 %v2018, %v2017
    %v2087 = vpack.c.b16 %v2020, %v2019
    %v2088 = vpack.c.b16 %v2022, %v2021
    %v2089 = vpack.c.b16 %v2024, %v2023
    %v2090 = vpack.c.b16 %v2026, %v2025
    %2155 = vmatprep.subr.bf16.mxu0 0
    %2156 = vmatpush1.bf16.msra.mxu0 %v2027
    %2157 = vmatprep.subr.bf16.mxu0 0
    %2158 = vmatpush1.bf16.msra.mxu0 %v2028
    %2159 = vmatprep.subr.bf16.mxu0 0
    %2160 = vmatpush1.bf16.msra.mxu0 %v2029
    %2161 = vmatprep.subr.bf16.mxu0 0
    %2162 = vmatpush1.bf16.msra.mxu0 %v2030
    %2163 = vmatprep.subr.bf16.mxu0 0
    %2164 = vmatpush1.bf16.msra.mxu0 %v2031
    %2165 = vmatprep.subr.bf16.mxu0 0
    %2166 = vmatpush1.bf16.msra.mxu0 %v2032
    %2167 = vmatprep.subr.bf16.mxu0 0
    %2168 = vmatpush1.bf16.msra.mxu0 %v2033
    %2169 = vmatprep.subr.bf16.mxu0 0
    %2170 = vmatpush1.bf16.msra.mxu0 %v2034
    %2171 = vmatprep.subr.bf16.mxu0 0
    %2172 = vmatpush1.bf16.msra.mxu0 %v2035
    %2173 = vmatprep.subr.bf16.mxu0 0
    %2174 = vmatpush1.bf16.msra.mxu0 %v2036
    %2175 = vmatprep.subr.bf16.mxu0 0
    %2176 = vmatpush1.bf16.msra.mxu0 %v2037
    %2177 = vmatprep.subr.bf16.mxu0 0
    %2178 = vmatpush1.bf16.msra.mxu0 %v2038
    %2179 = vmatprep.subr.bf16.mxu0 0
    %2180 = vmatpush1.bf16.msra.mxu0 %v2039
    %2181 = vmatprep.subr.bf16.mxu0 0
    %2182 = vmatpush1.bf16.msra.mxu0 %v2040
    %2183 = vmatprep.subr.bf16.mxu0 0
    %2184 = vmatpush1.bf16.msra.mxu0 %v2041
    %2185 = vmatprep.subr.bf16.mxu0 0
    %2186 = vmatpush1.bf16.msra.mxu0 %v2042
    %2187 = vmatprep.mubr.bf16.mxu0 %v1629
    %2188 = vmatmul.mubr.bf16.gmra.mrb[0].mxu0 %v1628
    %v2189 = vpop.f32.mrb[0].mxu0
    %v2190 = vadd.f32 %v1769, %v2189
    %v2191 = vpop.f32.mrb[0].mxu0
    %v2192 = vpop.f32.mrb[0].mxu0
    %v2193 = vpop.f32.mrb[0].mxu0
    %2194 = vdwg.mxu0
    %2195 = vmatprep.subr.bf16.mxu0 0
    %2196 = vmatpush1.bf16.msra.mxu0 %v2043
    %2197 = vmatprep.subr.bf16.mxu0 0
    %2198 = vmatpush1.bf16.msra.mxu0 %v2044
    %2199 = vmatprep.subr.bf16.mxu0 0
    %2200 = vmatpush1.bf16.msra.mxu0 %v2045
    %2201 = vmatprep.subr.bf16.mxu0 0
    %2202 = vmatpush1.bf16.msra.mxu0 %v2046
    %2203 = vmatprep.subr.bf16.mxu0 0
    %2204 = vmatpush1.bf16.msra.mxu0 %v2047
    %2205 = vmatprep.subr.bf16.mxu0 0
    %2206 = vmatpush1.bf16.msra.mxu0 %v2048
    %2207 = vmatprep.subr.bf16.mxu0 0
    %2208 = vmatpush1.bf16.msra.mxu0 %v2049
    %2209 = vmatprep.subr.bf16.mxu0 0
    %2210 = vmatpush1.bf16.msra.mxu0 %v2050
    %2211 = vmatprep.subr.bf16.mxu0 0
    %2212 = vmatpush1.bf16.msra.mxu0 %v2051
    %2213 = vmatprep.subr.bf16.mxu0 0
    %2214 = vmatpush1.bf16.msra.mxu0 %v2052
    %2215 = vmatprep.subr.bf16.mxu0 0
    %2216 = vmatpush1.bf16.msra.mxu0 %v2053
    %2217 = vmatprep.subr.bf16.mxu0 0
    %2218 = vmatpush1.bf16.msra.mxu0 %v2054
    %2219 = vmatprep.subr.bf16.mxu0 0
    %2220 = vmatpush1.bf16.msra.mxu0 %v2055
    %2221 = vmatprep.subr.bf16.mxu0 0
    %2222 = vmatpush1.bf16.msra.mxu0 %v2056
    %2223 = vmatprep.subr.bf16.mxu0 0
    %2224 = vmatpush1.bf16.msra.mxu0 %v2057
    %2225 = vmatprep.subr.bf16.mxu0 0
    %2226 = vmatpush1.bf16.msra.mxu0 %v2058
    %2227 = vmatprep.mubr.bf16.mxu0 %v1631
    %2228 = vmatmul.mubr.bf16.gmra.mrb[0].mxu0 %v1630
    %v2229 = vpop.f32.mrb[0].mxu0
    %v2230 = vadd.f32 %v2190, %v2229
    %v2231 = vpop.f32.mrb[0].mxu0
    %v2232 = vpop.f32.mrb[0].mxu0
    %v2233 = vpop.f32.mrb[0].mxu0
    %2234 = vdwg.mxu0
    %2235 = vmatprep.subr.bf16.mxu0 0
    %2236 = vmatpush1.bf16.msra.mxu0 %v2059
    %2237 = vmatprep.subr.bf16.mxu0 0
    %2238 = vmatpush1.bf16.msra.mxu0 %v2060
    %2239 = vmatprep.subr.bf16.mxu0 0
    %2240 = vmatpush1.bf16.msra.mxu0 %v2061
    %2241 = vmatprep.subr.bf16.mxu0 0
    %2242 = vmatpush1.bf16.msra.mxu0 %v2062
    %2243 = vmatprep.subr.bf16.mxu0 0
    %2244 = vmatpush1.bf16.msra.mxu0 %v2063
    %2245 = vmatprep.subr.bf16.mxu0 0
    %2246 = vmatpush1.bf16.msra.mxu0 %v2064
    %2247 = vmatprep.subr.bf16.mxu0 0
    %2248 = vmatpush1.bf16.msra.mxu0 %v2065
    %2249 = vmatprep.subr.bf16.mxu0 0
    %2250 = vmatpush1.bf16.msra.mxu0 %v2066
    %2251 = vmatprep.subr.bf16.mxu0 0
    %2252 = vmatpush1.bf16.msra.mxu0 %v2067
    %2253 = vmatprep.subr.bf16.mxu0 0
    %2254 = vmatpush1.bf16.msra.mxu0 %v2068
    %2255 = vmatprep.subr.bf16.mxu0 0
    %2256 = vmatpush1.bf16.msra.mxu0 %v2069
    %2257 = vmatprep.subr.bf16.mxu0 0
    %2258 = vmatpush1.bf16.msra.mxu0 %v2070
    %2259 = vmatprep.subr.bf16.mxu0 0
    %2260 = vmatpush1.bf16.msra.mxu0 %v2071
    %2261 = vmatprep.subr.bf16.mxu0 0
    %2262 = vmatpush1.bf16.msra.mxu0 %v2072
    %2263 = vmatprep.subr.bf16.mxu0 0
    %2264 = vmatpush1.bf16.msra.mxu0 %v2073
    %2265 = vmatprep.subr.bf16.mxu0 0
    %2266 = vmatpush1.bf16.msra.mxu0 %v2074
    %2267 = vmatprep.mubr.bf16.mxu0 %v1633
    %2268 = vmatmul.mubr.bf16.gmra.mrb[0].mxu0 %v1632
    %v2269 = vpop.f32.mrb[0].mxu0
    %v2270 = vadd.f32 %v2230, %v2269
    %v2271 = vpop.f32.mrb[0].mxu0
    %v2272 = vpop.f32.mrb[0].mxu0
    %v2273 = vpop.f32.mrb[0].mxu0
    %2274 = vdwg.mxu0
    %2275 = vmatprep.subr.bf16.mxu0 0
    %2276 = vmatpush1.bf16.msra.mxu0 %v2075
    %2277 = vmatprep.subr.bf16.mxu0 0
    %2278 = vmatpush1.bf16.msra.mxu0 %v2076
    %2279 = vmatprep.subr.bf16.mxu0 0
    %2280 = vmatpush1.bf16.msra.mxu0 %v2077
    %2281 = vmatprep.subr.bf16.mxu0 0
    %2282 = vmatpush1.bf16.msra.mxu0 %v2078
    %2283 = vmatprep.subr.bf16.mxu0 0
    %2284 = vmatpush1.bf16.msra.mxu0 %v2079
    %2285 = vmatprep.subr.bf16.mxu0 0
    %2286 = vmatpush1.bf16.msra.mxu0 %v2080
    %2287 = vmatprep.subr.bf16.mxu0 0
    %2288 = vmatpush1.bf16.msra.mxu0 %v2081
    %2289 = vmatprep.subr.bf16.mxu0 0
    %2290 = vmatpush1.bf16.msra.mxu0 %v2082
    %2291 = vmatprep.subr.bf16.mxu0 0
    %2292 = vmatpush1.bf16.msra.mxu0 %v2083
    %2293 = vmatprep.subr.bf16.mxu0 0
    %2294 = vmatpush1.bf16.msra.mxu0 %v2084
    %2295 = vmatprep.subr.bf16.mxu0 0
    %2296 = vmatpush1.bf16.msra.mxu0 %v2085
    %2297 = vmatprep.subr.bf16.mxu0 0
    %2298 = vmatpush1.bf16.msra.mxu0 %v2086
    %2299 = vmatprep.subr.bf16.mxu0 0
    %2300 = vmatpush1.bf16.msra.mxu0 %v2087
    %2301 = vmatprep.subr.bf16.mxu0 0
    %2302 = vmatpush1.bf16.msra.mxu0 %v2088
    %2303 = vmatprep.subr.bf16.mxu0 0
    %2304 = vmatpush1.bf16.msra.mxu0 %v2089
    %2305 = vmatprep.subr.bf16.mxu0 0
    %2306 = vmatpush1.bf16.msra.mxu0 %v2090
    %2307 = vmatprep.mubr.bf16.mxu0 %v1635
    %2308 = vmatmul.mubr.bf16.gmra.mrb[0].mxu0 %v1634
    %v2309 = vpop.f32.mrb[0].mxu0
    %v2310 = vadd.f32 %v2270, %v2309
    %v2311 = vpop.f32.mrb[0].mxu0
    %v2312 = vpop.f32.mrb[0].mxu0
    %v2313 = vpop.f32.mrb[0].mxu0
    %2314 = vdwg.mxu0
    %vm2315 = vcmask 254976
    %2316 = vst.msk [vmem:[#allocation2] sm:$0x3] %vm2315, %v2310
    // Predicated region
    $region46: #{mega_forward.1} parent=1 // pred_check
      _
    $region47: #{mega_forward.1} parent=1 // pred_check_branch
      %2318 = sbr.rel (0) target = $region49
    $region48: #{mega_forward.1} parent=1 // pred_region
      %s2320 = ssub.s32 32, 32
      %2321 = vsyncadd [#allocation3], %s2320
      %s2323 = sshll.u32 [#allocation2], 4
      %s2324 = int_to_ptr.vmem [resolvable:$true] %s2323
      %2326 = dma.vmem_to_hbm [thread:$0]  %s2324, 32, %s11, [#allocation3]
    $region49: #{mega_forward.1} parent=1 // pred_fallthru
      _
    // Predicated region
    $region50: #{mega_forward.1} parent=1 // pred_check
      _
    $region51: #{mega_forward.1} parent=1 // pred_check_branch
      %2328 = sbr.rel (0) target = $region53
    $region52: #{mega_forward.1} parent=1 // pred_region
      %2329 = dma.done [#allocation3], 32
    $region53: #{mega_forward.1} parent=1 // pred_fallthru
      _
    %2330 = vsyncpa [#allocation3], 1

</llo_original>
